<compile_context>
chip_gen: v6e
topology: v6e:2x2x1
jax: 0.10.0
libtpu: 0.0.40
codegen_flags: <defaults>
</compile_context>

<pallas_src>
import jax
import jax.numpy as jnp
from jax.experimental import pallas as pl
from jax.experimental.pallas import tpu as pltpu


def _fused_mlp_kernel(x_ref, w1_ref, s1_ref, w2_ref, s2_ref, w3_ref, s3_ref,
                      o_ref):
    # x_ref:  (Bp, Kp)   bf16 padded input
    # wN_ref: (Kin, Kout) bf16, BN scale pre-folded into columns
    # sN_ref: (1, Kout)  f32 folded shift (linear bias + BN beta/mean)
    # o_ref:  (Bp, 256)  f32
    h = jnp.dot(x_ref[...], w1_ref[...], preferred_element_type=jnp.float32)
    h = jnp.maximum(h + s1_ref[...], 0.0).astype(jnp.bfloat16)

    h = jnp.dot(h, w2_ref[...], preferred_element_type=jnp.float32)
    h = jnp.maximum(h + s2_ref[...], 0.0).astype(jnp.bfloat16)

    h = jnp.dot(h, w3_ref[...], preferred_element_type=jnp.float32)
    o_ref[...] = jnp.maximum(h + s3_ref[...], 0.0).astype(o_ref.dtype)


def init_params(input_dim, key, *, k_pad=128, eps=1e-5):
    """Deterministic synthetic parameters matching ImprovedAlexNet's shapes,
    with BN (eval) + bias folded and weights stored (in, out) in bf16."""
    dims = [(input_dim, 1024), (1024, 512), (512, 256)]
    params = []
    for i, (k_in, k_out) in enumerate(dims):
        kw, kb = jax.random.split(jax.random.fold_in(key, i))
        bound = 1.0 / jnp.sqrt(jnp.float32(k_in))
        # nn.Linear default-ish init, pre-transposed to (in, out)
        w_t = jax.random.uniform(kw, (k_in, k_out), jnp.float32, -bound, bound)
        b = jax.random.uniform(kb, (k_out,), jnp.float32, -bound, bound)
        # BatchNorm1d default state: gamma=1, beta=0, mean=0, var=1
        gamma = jnp.ones((k_out,), jnp.float32)
        beta = jnp.zeros((k_out,), jnp.float32)
        running_mean = jnp.zeros((k_out,), jnp.float32)
        running_var = jnp.ones((k_out,), jnp.float32)

        scale = gamma / jnp.sqrt(running_var + eps)
        shift = (b - running_mean) * scale + beta
        w_scaled = w_t * scale[None, :]          # fold BN scale into weight cols

        if k_in % k_pad != 0:                    # pad contraction dim (layer 1)
            k_in_p = -(-k_in // k_pad) * k_pad
            w_scaled = jnp.zeros((k_in_p, k_out), jnp.float32).at[:k_in].set(
                w_scaled)

        params.append((w_scaled.astype(jnp.bfloat16),
                       shift.reshape(1, k_out).astype(jnp.float32)))
    return params


def improved_alexnet_forward(x, params):
    """x: (B, input_dim) f32 -> (B, 256) f32 features (eval-mode forward)."""
    (w1, s1), (w2, s2), (w3, s3) = params
    B, K = x.shape
    Kp = w1.shape[0]                   # padded contraction dim of layer 1
    Bp = -(-B // 8) * 8                # pad batch to a full sublane granule
    N1, N2, N3 = w1.shape[1], w2.shape[1], w3.shape[1]

    xp = jnp.zeros((Bp, Kp), jnp.bfloat16).at[:B, :K].set(
        x.astype(jnp.bfloat16))

    out = pl.pallas_call(
        _fused_mlp_kernel,
        out_shape=jax.ShapeDtypeStruct((Bp, N3), jnp.float32),
        grid_spec=pltpu.PrefetchScalarGridSpec(
            num_scalar_prefetch=0,
            grid=(1,),
            in_specs=[
                pl.BlockSpec((Bp, Kp), lambda i: (0, 0)),   # x (padded)
                pl.BlockSpec((Kp, N1), lambda i: (0, 0)),   # W1'
                pl.BlockSpec((1, N1), lambda i: (0, 0)),    # shift1
                pl.BlockSpec((N1, N2), lambda i: (0, 0)),   # W2'
                pl.BlockSpec((1, N2), lambda i: (0, 0)),    # shift2
                pl.BlockSpec((N2, N3), lambda i: (0, 0)),   # W3'
                pl.BlockSpec((1, N3), lambda i: (0, 0)),    # shift3
            ],
            out_specs=pl.BlockSpec((Bp, N3), lambda i: (0, 0)),
        ),
        compiler_params=pltpu.CompilerParams(
            dimension_semantics=("arbitrary",),
        ),
    )(xp, w1, s1, w2, s2, w3, s3)

    return out[:B]


def _ref_forward(x, params):
    """Pure-JAX reference using the same folded bf16 weights / f32 accumulation."""
    Kp = params[0][0].shape[0]
    h = x.astype(jnp.bfloat16)
    h = jnp.pad(h, ((0, 0), (0, Kp - h.shape[1])))
    n_layers = len(params)
    for i, (w, s) in enumerate(params):
        h = jnp.dot(h, w, preferred_element_type=jnp.float32) + s
        h = jnp.maximum(h, 0.0)
        if i < n_layers - 1:
            h = h.astype(jnp.bfloat16)
    return h


if __name__ == "__main__":
    key = jax.random.PRNGKey(0)
    k_x, k_p = jax.random.split(key)

    batch, input_dim = 4, 32
    x = jax.random.normal(k_x, (batch, input_dim), jnp.float32)
    params = init_params(input_dim, k_p)

    out = jax.jit(improved_alexnet_forward)(x, params)
    jax.block_until_ready(out)

    ref = _ref_forward(x, params)

    assert out.shape == (batch, 256), out.shape
    assert out.dtype == jnp.float32
    assert bool(jnp.all(out >= 0.0))                       # ReLU output
    assert bool(jnp.allclose(out, ref, atol=1e-2, rtol=1e-2))
    print("KERNEL_OK")
</pallas_src>

<mosaic_0001>
module attributes {stable_mosaic.version = 11 : i64} {
  func.func @_fused_mlp_kernel(%arg0: i32, %arg1: memref<8x128xbf16, #tpu.memory_space<vmem>>, %arg2: memref<128x1024xbf16, #tpu.memory_space<vmem>>, %arg3: memref<1x1024xf32, #tpu.memory_space<vmem>>, %arg4: memref<1024x512xbf16, #tpu.memory_space<vmem>>, %arg5: memref<1x512xf32, #tpu.memory_space<vmem>>, %arg6: memref<512x256xbf16, #tpu.memory_space<vmem>>, %arg7: memref<1x256xf32, #tpu.memory_space<vmem>>, %arg8: memref<8x256xf32, #tpu.memory_space<vmem>>) attributes {dimension_semantics = [#tpu.dimension_semantics<arbitrary>], iteration_bounds = array<i64: 1>, scalar_prefetch = 0 : i64, scratch_operands = 0 : i64, tpu.core_type = #tpu.core_type<tc>, window_params = [{pipeline_mode = #tpu.pipeline_mode<synchronous>, transform_indices = @transform_0, window_bounds = array<i64: 8, 128>}, {pipeline_mode = #tpu.pipeline_mode<synchronous>, transform_indices = @transform_1, window_bounds = array<i64: 128, 1024>}, {pipeline_mode = #tpu.pipeline_mode<synchronous>, transform_indices = @transform_2, window_bounds = array<i64: 1, 1024>}, {pipeline_mode = #tpu.pipeline_mode<synchronous>, transform_indices = @transform_3, window_bounds = array<i64: 1024, 512>}, {pipeline_mode = #tpu.pipeline_mode<synchronous>, transform_indices = @transform_4, window_bounds = array<i64: 1, 512>}, {pipeline_mode = #tpu.pipeline_mode<synchronous>, transform_indices = @transform_5, window_bounds = array<i64: 512, 256>}, {pipeline_mode = #tpu.pipeline_mode<synchronous>, transform_indices = @transform_6, window_bounds = array<i64: 1, 256>}, {pipeline_mode = #tpu.pipeline_mode<synchronous>, transform_indices = @transform_7, window_bounds = array<i64: 8, 256>}]} {
    %c0 = arith.constant 0 : index
    %c0_0 = arith.constant 0 : index
    %0 = vector.load %arg1[%c0, %c0_0] : memref<8x128xbf16, #tpu.memory_space<vmem>>, vector<8x128xbf16>
    %c0_1 = arith.constant 0 : index
    %c0_2 = arith.constant 0 : index
    %1 = vector.load %arg2[%c0_1, %c0_2] : memref<128x1024xbf16, #tpu.memory_space<vmem>>, vector<128x1024xbf16>
    %cst = arith.constant dense<0.000000e+00> : vector<8x1024xf32>
    %2 = tpu.matmul %0, %1, %cst {dimension_numbers = #tpu.dot_dimension_numbers<[1], [0], [0], [1], [0, 0, 1, 1], [], []>} : vector<8x128xbf16>, vector<128x1024xbf16>, vector<8x1024xf32> -> vector<8x1024xf32>
    %c0_3 = arith.constant 0 : index
    %c0_4 = arith.constant 0 : index
    %3 = vector.load %arg3[%c0_3, %c0_4] : memref<1x1024xf32, #tpu.memory_space<vmem>>, vector<1x1024xf32>
    %4 = vector.broadcast %3 : vector<1x1024xf32> to vector<8x1024xf32>
    %5 = arith.addf %2, %4 : vector<8x1024xf32>
    %cst_5 = arith.constant 0.000000e+00 : f32
    %6 = vector.broadcast %cst_5 : f32 to vector<8x1024xf32>
    %7 = arith.maximumf %5, %6 : vector<8x1024xf32>
    %8 = arith.truncf %7 : vector<8x1024xf32> to vector<8x1024xbf16>
    %c0_6 = arith.constant 0 : index
    %c0_7 = arith.constant 0 : index
    %9 = vector.load %arg4[%c0_6, %c0_7] : memref<1024x512xbf16, #tpu.memory_space<vmem>>, vector<1024x512xbf16>
    %cst_8 = arith.constant dense<0.000000e+00> : vector<8x512xf32>
    %10 = tpu.matmul %8, %9, %cst_8 {dimension_numbers = #tpu.dot_dimension_numbers<[1], [0], [0], [1], [0, 0, 1, 1], [], []>} : vector<8x1024xbf16>, vector<1024x512xbf16>, vector<8x512xf32> -> vector<8x512xf32>
    %c0_9 = arith.constant 0 : index
    %c0_10 = arith.constant 0 : index
    %11 = vector.load %arg5[%c0_9, %c0_10] : memref<1x512xf32, #tpu.memory_space<vmem>>, vector<1x512xf32>
    %12 = vector.broadcast %11 : vector<1x512xf32> to vector<8x512xf32>
    %13 = arith.addf %10, %12 : vector<8x512xf32>
    %cst_11 = arith.constant 0.000000e+00 : f32
    %14 = vector.broadcast %cst_11 : f32 to vector<8x512xf32>
    %15 = arith.maximumf %13, %14 : vector<8x512xf32>
    %16 = arith.truncf %15 : vector<8x512xf32> to vector<8x512xbf16>
    %c0_12 = arith.constant 0 : index
    %c0_13 = arith.constant 0 : index
    %17 = vector.load %arg6[%c0_12, %c0_13] : memref<512x256xbf16, #tpu.memory_space<vmem>>, vector<512x256xbf16>
    %cst_14 = arith.constant dense<0.000000e+00> : vector<8x256xf32>
    %18 = tpu.matmul %16, %17, %cst_14 {dimension_numbers = #tpu.dot_dimension_numbers<[1], [0], [0], [1], [0, 0, 1, 1], [], []>} : vector<8x512xbf16>, vector<512x256xbf16>, vector<8x256xf32> -> vector<8x256xf32>
    %c0_15 = arith.constant 0 : index
    %c0_16 = arith.constant 0 : index
    %19 = vector.load %arg7[%c0_15, %c0_16] : memref<1x256xf32, #tpu.memory_space<vmem>>, vector<1x256xf32>
    %20 = vector.broadcast %19 : vector<1x256xf32> to vector<8x256xf32>
    %21 = arith.addf %18, %20 : vector<8x256xf32>
    %cst_17 = arith.constant 0.000000e+00 : f32
    %22 = vector.broadcast %cst_17 : f32 to vector<8x256xf32>
    %23 = arith.maximumf %21, %22 : vector<8x256xf32>
    %c0_18 = arith.constant 0 : index
    %c0_19 = arith.constant 0 : index
    %24 = vector.load %arg8[%c0_18, %c0_19] : memref<8x256xf32, #tpu.memory_space<vmem>>, vector<8x256xf32>
    tpu.vector_store %arg8[%c0_18, %c0_19], %23 {strides = array<i32>} : memref<8x256xf32, #tpu.memory_space<vmem>>, vector<8x256xf32>,
    return
  }
  func.func @transform_0(%arg0: i32) -> (i32, i32) {
    %c0_i32 = arith.constant 0 : i32
    %c0_i32_0 = arith.constant 0 : i32
    %c0_i32_1 = arith.constant 0 : i32
    return %c0_i32, %c0_i32_0 : i32, i32
  }
  func.func @transform_1(%arg0: i32) -> (i32, i32) {
    %c0_i32 = arith.constant 0 : i32
    %c0_i32_0 = arith.constant 0 : i32
    %c0_i32_1 = arith.constant 0 : i32
    return %c0_i32, %c0_i32_0 : i32, i32
  }
  func.func @transform_2(%arg0: i32) -> (i32, i32) {
    %c0_i32 = arith.constant 0 : i32
    %c0_i32_0 = arith.constant 0 : i32
    %c0_i32_1 = arith.constant 0 : i32
    return %c0_i32, %c0_i32_0 : i32, i32
  }
  func.func @transform_3(%arg0: i32) -> (i32, i32) {
    %c0_i32 = arith.constant 0 : i32
    %c0_i32_0 = arith.constant 0 : i32
    %c0_i32_1 = arith.constant 0 : i32
    return %c0_i32, %c0_i32_0 : i32, i32
  }
  func.func @transform_4(%arg0: i32) -> (i32, i32) {
    %c0_i32 = arith.constant 0 : i32
    %c0_i32_0 = arith.constant 0 : i32
    %c0_i32_1 = arith.constant 0 : i32
    return %c0_i32, %c0_i32_0 : i32, i32
  }
  func.func @transform_5(%arg0: i32) -> (i32, i32) {
    %c0_i32 = arith.constant 0 : i32
    %c0_i32_0 = arith.constant 0 : i32
    %c0_i32_1 = arith.constant 0 : i32
    return %c0_i32, %c0_i32_0 : i32, i32
  }
  func.func @transform_6(%arg0: i32) -> (i32, i32) {
    %c0_i32 = arith.constant 0 : i32
    %c0_i32_0 = arith.constant 0 : i32
    %c0_i32_1 = arith.constant 0 : i32
    return %c0_i32, %c0_i32_0 : i32, i32
  }
  func.func @transform_7(%arg0: i32) -> (i32, i32) {
    %c0_i32 = arith.constant 0 : i32
    %c0_i32_0 = arith.constant 0 : i32
    %c0_i32_1 = arith.constant 0 : i32
    return %c0_i32, %c0_i32_0 : i32, i32
  }
}

</mosaic_0001>

<llo_original>
// kernel: improved_alexnet_forward.1
$region0: #{improved_alexnet_forward.1}
  #allocation0 [shape = 'u32[]', space=smem, size = 0x4, offset = 0x4, fixed_abs, tag = 'smem constant byte address 0x4 - core index']
  #allocation1 [shape = 'u32[144,128]{1,0:T(1,128)}', space=vmem, size = 0x12000, scoped, tag = 'internal scratch']
  %s0 = inlined_call_operand.vmem [shape: bf16[8,128], index: 0, kind: input, shape index: {}]
  %s1 = inlined_call_operand.hbm [shape: bf16[128,1024], index: 1, kind: input, shape index: {}]
  %s2 = inlined_call_operand.vmem [shape: f32[1,1024], index: 2, kind: input, shape index: {}]
  %s3 = inlined_call_operand.hbm [shape: bf16[1024,512], index: 3, kind: input, shape index: {}]
  %s4 = inlined_call_operand.vmem [shape: f32[1,512], index: 4, kind: input, shape index: {}]
  %s5 = inlined_call_operand.hbm [shape: bf16[512,256], index: 5, kind: input, shape index: {}]
  %s6 = inlined_call_operand.vmem [shape: f32[1,256], index: 6, kind: input, shape index: {}]
  %s7 = inlined_call_operand.vmem [shape: f32[8,256], index: 7, kind: output, shape index: {}]
  %s8 = sld [smem:[#allocation0]]
  $region50: #{improved_alexnet_forward.1} parent=0
    _
  %s10 = ssub.s32 1, %s8
  %s11 = scalar_select 0, %s10, %s8
  $region1: #{improved_alexnet_forward.1} parent=0
    #allocation2 [shape = 'u8[262144]{0}', space=vmem, size = 0x40000, scoped, tag = 'input window, operand 1, single buffered']
    #allocation3 [shape = 's32[1]{0}', space=sflag, size = 0x4, scoped, tag = 'scoped memory for improved_alexnet_forward.1']
    #allocation4 [shape = 'u8[1048576]{0}', space=vmem, size = 0x100000, scoped, tag = 'input window, operand 3, single buffered']
    #allocation5 [shape = 's32[1]{0}', space=sflag, size = 0x4, scoped, tag = 'scoped memory for improved_alexnet_forward.1']
    #allocation6 [shape = 'u8[262144]{0}', space=vmem, size = 0x40000, scoped, tag = 'input window, operand 5, single buffered']
    %12 = vsyncpa [#allocation3], 0
    %13 = vsyncpa [#allocation5], 0
    // Predicated region
    $region2: #{improved_alexnet_forward.1} parent=1 // pred_check
      _
    $region3: #{improved_alexnet_forward.1} parent=1 // pred_check_branch
      %15 = sbr.rel (0) target = $region5
    $region4: #{improved_alexnet_forward.1} parent=1 // pred_region
      _
    $region5: #{improved_alexnet_forward.1} parent=1 // pred_fallthru
      _
    // Predicated region
    $region6: #{improved_alexnet_forward.1} parent=1 // pred_check
      _
    $region7: #{improved_alexnet_forward.1} parent=1 // pred_check_branch
      %17 = sbr.rel (0) target = $region9
    $region8: #{improved_alexnet_forward.1} parent=1 // pred_region
      %s19 = ssub.s32 8192, 8192
      %20 = vsyncadd [#allocation3], %s19
      %s21 = sshll.u32 [#allocation2], 4
      %s22 = int_to_ptr.vmem [resolvable:$true] %s21
      %27 = dma.hbm_to_vmem [thread:$0]  %s1, 8192, %s22, [#allocation3], 512, 512, 32
    $region9: #{improved_alexnet_forward.1} parent=1 // pred_fallthru
      _
    // Predicated region
    $region10: #{improved_alexnet_forward.1} parent=1 // pred_check
      _
    $region11: #{improved_alexnet_forward.1} parent=1 // pred_check_branch
      %29 = sbr.rel (0) target = $region13
    $region12: #{improved_alexnet_forward.1} parent=1 // pred_region
      _
    $region13: #{improved_alexnet_forward.1} parent=1 // pred_fallthru
      _
    // Predicated region
    $region14: #{improved_alexnet_forward.1} parent=1 // pred_check
      _
    $region15: #{improved_alexnet_forward.1} parent=1 // pred_check_branch
      %31 = sbr.rel (0) target = $region17
    $region16: #{improved_alexnet_forward.1} parent=1 // pred_region
      %s33 = ssub.s32 32768, 32768
      %34 = vsyncadd [#allocation5], %s33
      %s35 = sshll.u32 [#allocation4], 4
      %s36 = int_to_ptr.vmem [resolvable:$true] %s35
      %41 = dma.hbm_to_vmem [thread:$0]  %s3, 32768, %s36, [#allocation5], 256, 256, 16
    $region17: #{improved_alexnet_forward.1} parent=1 // pred_fallthru
      _
    // Predicated region
    $region18: #{improved_alexnet_forward.1} parent=1 // pred_check
      _
    $region19: #{improved_alexnet_forward.1} parent=1 // pred_check_branch
      %43 = sbr.rel (0) target = $region21
    $region20: #{improved_alexnet_forward.1} parent=1 // pred_region
      _
    $region21: #{improved_alexnet_forward.1} parent=1 // pred_fallthru
      _
    // Predicated region
    $region22: #{improved_alexnet_forward.1} parent=1 // pred_check
      _
    $region23: #{improved_alexnet_forward.1} parent=1 // pred_check_branch
      %45 = sbr.rel (0) target = $region25
    $region24: #{improved_alexnet_forward.1} parent=1 // pred_region
      %s47 = ssub.s32 8192, 8192
      %48 = vsyncadd [#allocation5], %s47
      %s49 = sshll.u32 [#allocation6], 4
      %s50 = int_to_ptr.vmem [resolvable:$true] %s49
      %55 = dma.hbm_to_vmem [thread:$0]  %s5, 8192, %s50, [#allocation5], 128, 128, 8
    $region25: #{improved_alexnet_forward.1} parent=1 // pred_fallthru
      _
    // Predicated region
    $region26: #{improved_alexnet_forward.1} parent=1 // pred_check
      _
    $region27: #{improved_alexnet_forward.1} parent=1 // pred_check_branch
      %57 = sbr.rel (0) target = $region29
    $region28: #{improved_alexnet_forward.1} parent=1 // pred_region
      _
    $region29: #{improved_alexnet_forward.1} parent=1 // pred_fallthru
      _
    // Predicated region
    $region30: #{improved_alexnet_forward.1} parent=1 // pred_check
      _
    $region31: #{improved_alexnet_forward.1} parent=1 // pred_check_branch
      %59 = sbr.rel (0) target = $region33
    $region32: #{improved_alexnet_forward.1} parent=1 // pred_region
      %60 = dma.done [#allocation3], 8192
    $region33: #{improved_alexnet_forward.1} parent=1 // pred_fallthru
      _
    // Predicated region
    $region34: #{improved_alexnet_forward.1} parent=1 // pred_check
      _
    $region35: #{improved_alexnet_forward.1} parent=1 // pred_check_branch
      %62 = sbr.rel (0) target = $region37
    $region36: #{improved_alexnet_forward.1} parent=1 // pred_region
      %63 = dma.done [#allocation5], 32768
    $region37: #{improved_alexnet_forward.1} parent=1 // pred_fallthru
      _
    // Predicated region
    $region38: #{improved_alexnet_forward.1} parent=1 // pred_check
      _
    $region39: #{improved_alexnet_forward.1} parent=1 // pred_check_branch
      %65 = sbr.rel (0) target = $region41
    $region40: #{improved_alexnet_forward.1} parent=1 // pred_region
      %66 = dma.done [#allocation5], 8192
    $region41: #{improved_alexnet_forward.1} parent=1 // pred_fallthru
      _
    %v68 = vld [vmem:[%s0] sm:$0xf]
    %v69 = vld [vmem:[#allocation2] sm:$0xff]
    %v70 = vld [vmem:[#allocation2 + $0x8] sm:$0xff]
    %v71 = vld [vmem:[#allocation2 + $0x10] sm:$0xff]
    %v72 = vld [vmem:[#allocation2 + $0x18] sm:$0xff]
    %v73 = vld [vmem:[#allocation2 + $0x20] sm:$0xff]
    %v74 = vld [vmem:[#allocation2 + $0x28] sm:$0xff]
    %v75 = vld [vmem:[#allocation2 + $0x30] sm:$0xff]
    %v76 = vld [vmem:[#allocation2 + $0x38] sm:$0xff]
    %v77 = vld [vmem:[#allocation2 + $0x40] sm:$0xff]
    %v78 = vld [vmem:[#allocation2 + $0x48] sm:$0xff]
    %v79 = vld [vmem:[#allocation2 + $0x50] sm:$0xff]
    %v80 = vld [vmem:[#allocation2 + $0x58] sm:$0xff]
    %v81 = vld [vmem:[#allocation2 + $0x60] sm:$0xff]
    %v82 = vld [vmem:[#allocation2 + $0x68] sm:$0xff]
    %v83 = vld [vmem:[#allocation2 + $0x70] sm:$0xff]
    %v84 = vld [vmem:[#allocation2 + $0x78] sm:$0xff]
    %v85 = vld [vmem:[#allocation2 + $0x80] sm:$0xff]
    %v86 = vld [vmem:[#allocation2 + $0x88] sm:$0xff]
    %v87 = vld [vmem:[#allocation2 + $0x90] sm:$0xff]
    %v88 = vld [vmem:[#allocation2 + $0x98] sm:$0xff]
    %v89 = vld [vmem:[#allocation2 + $0xa0] sm:$0xff]
    %v90 = vld [vmem:[#allocation2 + $0xa8] sm:$0xff]
    %v91 = vld [vmem:[#allocation2 + $0xb0] sm:$0xff]
    %v92 = vld [vmem:[#allocation2 + $0xb8] sm:$0xff]
    %v93 = vld [vmem:[#allocation2 + $0xc0] sm:$0xff]
    %v94 = vld [vmem:[#allocation2 + $0xc8] sm:$0xff]
    %v95 = vld [vmem:[#allocation2 + $0xd0] sm:$0xff]
    %v96 = vld [vmem:[#allocation2 + $0xd8] sm:$0xff]
    %v97 = vld [vmem:[#allocation2 + $0xe0] sm:$0xff]
    %v98 = vld [vmem:[#allocation2 + $0xe8] sm:$0xff]
    %v99 = vld [vmem:[#allocation2 + $0xf0] sm:$0xff]
    %v100 = vld [vmem:[#allocation2 + $0xf8] sm:$0xff]
    %v101 = vld [vmem:[#allocation2 + $0x100] sm:$0xff]
    %v102 = vld [vmem:[#allocation2 + $0x108] sm:$0xff]
    %v103 = vld [vmem:[#allocation2 + $0x110] sm:$0xff]
    %v104 = vld [vmem:[#allocation2 + $0x118] sm:$0xff]
    %v105 = vld [vmem:[#allocation2 + $0x120] sm:$0xff]
    %v106 = vld [vmem:[#allocation2 + $0x128] sm:$0xff]
    %v107 = vld [vmem:[#allocation2 + $0x130] sm:$0xff]
    %v108 = vld [vmem:[#allocation2 + $0x138] sm:$0xff]
    %v109 = vld [vmem:[#allocation2 + $0x140] sm:$0xff]
    %v110 = vld [vmem:[#allocation2 + $0x148] sm:$0xff]
    %v111 = vld [vmem:[#allocation2 + $0x150] sm:$0xff]
    %v112 = vld [vmem:[#allocation2 + $0x158] sm:$0xff]
    %v113 = vld [vmem:[#allocation2 + $0x160] sm:$0xff]
    %v114 = vld [vmem:[#allocation2 + $0x168] sm:$0xff]
    %v115 = vld [vmem:[#allocation2 + $0x170] sm:$0xff]
    %v116 = vld [vmem:[#allocation2 + $0x178] sm:$0xff]
    %v117 = vld [vmem:[#allocation2 + $0x180] sm:$0xff]
    %v118 = vld [vmem:[#allocation2 + $0x188] sm:$0xff]
    %v119 = vld [vmem:[#allocation2 + $0x190] sm:$0xff]
    %v120 = vld [vmem:[#allocation2 + $0x198] sm:$0xff]
    %v121 = vld [vmem:[#allocation2 + $0x1a0] sm:$0xff]
    %v122 = vld [vmem:[#allocation2 + $0x1a8] sm:$0xff]
    %v123 = vld [vmem:[#allocation2 + $0x1b0] sm:$0xff]
    %v124 = vld [vmem:[#allocation2 + $0x1b8] sm:$0xff]
    %v125 = vld [vmem:[#allocation2 + $0x1c0] sm:$0xff]
    %v126 = vld [vmem:[#allocation2 + $0x1c8] sm:$0xff]
    %v127 = vld [vmem:[#allocation2 + $0x1d0] sm:$0xff]
    %v128 = vld [vmem:[#allocation2 + $0x1d8] sm:$0xff]
    %v129 = vld [vmem:[#allocation2 + $0x1e0] sm:$0xff]
    %v130 = vld [vmem:[#allocation2 + $0x1e8] sm:$0xff]
    %v131 = vld [vmem:[#allocation2 + $0x1f0] sm:$0xff]
    %v132 = vld [vmem:[#allocation2 + $0x1f8] sm:$0xff]
    %v133 = vld [vmem:[%s2] sm:$0xff]
    %v135 = vlaneseq
    %v136 = vshrl.u32 %v135, 7
    %v137 = vsub.s32 0, %v136
    %v138 = vrot.slane %v133, %v137
    %v139 = vlaneseq
    %v140 = vshrl.u32 %v139, 7
    %v141 = vsub.s32 1, %v140
    %v142 = vrot.slane %v133, %v141
    %v143 = vlaneseq
    %v144 = vshrl.u32 %v143, 7
    %v145 = vsub.s32 2, %v144
    %v146 = vrot.slane %v133, %v145
    %v147 = vlaneseq
    %v148 = vshrl.u32 %v147, 7
    %v149 = vsub.s32 3, %v148
    %v150 = vrot.slane %v133, %v149
    %v151 = vlaneseq
    %v152 = vshrl.u32 %v151, 7
    %v153 = vsub.s32 4, %v152
    %v154 = vrot.slane %v133, %v153
    %v155 = vlaneseq
    %v156 = vshrl.u32 %v155, 7
    %v157 = vsub.s32 5, %v156
    %v158 = vrot.slane %v133, %v157
    %v159 = vlaneseq
    %v160 = vshrl.u32 %v159, 7
    %v161 = vsub.s32 6, %v160
    %v162 = vrot.slane %v133, %v161
    %v163 = vlaneseq
    %v164 = vshrl.u32 %v163, 7
    %v165 = vsub.s32 7, %v164
    %v166 = vrot.slane %v133, %v165
    %v239 = vunpack.c.l.b16 %v69
    %v240 = vunpack.c.h.b16 %v69
    %v241 = vunpack.c.l.b16 %v70
    %v242 = vunpack.c.h.b16 %v70
    %v243 = vunpack.c.l.b16 %v71
    %v244 = vunpack.c.h.b16 %v71
    %v245 = vunpack.c.l.b16 %v72
    %v246 = vunpack.c.h.b16 %v72
    %v247 = vunpack.c.l.b16 %v73
    %v248 = vunpack.c.h.b16 %v73
    %v249 = vunpack.c.l.b16 %v74
    %v250 = vunpack.c.h.b16 %v74
    %v251 = vunpack.c.l.b16 %v75
    %v252 = vunpack.c.h.b16 %v75
    %v253 = vunpack.c.l.b16 %v76
    %v254 = vunpack.c.h.b16 %v76
    %v255 = vunpack.c.l.b16 %v77
    %v256 = vunpack.c.h.b16 %v77
    %v257 = vunpack.c.l.b16 %v78
    %v258 = vunpack.c.h.b16 %v78
    %v259 = vunpack.c.l.b16 %v79
    %v260 = vunpack.c.h.b16 %v79
    %v261 = vunpack.c.l.b16 %v80
    %v262 = vunpack.c.h.b16 %v80
    %v263 = vunpack.c.l.b16 %v81
    %v264 = vunpack.c.h.b16 %v81
    %v265 = vunpack.c.l.b16 %v82
    %v266 = vunpack.c.h.b16 %v82
    %v267 = vunpack.c.l.b16 %v83
    %v268 = vunpack.c.h.b16 %v83
    %v269 = vunpack.c.l.b16 %v84
    %v270 = vunpack.c.h.b16 %v84
    %v271 = vunpack.c.l.b16 %v85
    %v272 = vunpack.c.h.b16 %v85
    %v273 = vunpack.c.l.b16 %v86
    %v274 = vunpack.c.h.b16 %v86
    %v275 = vunpack.c.l.b16 %v87
    %v276 = vunpack.c.h.b16 %v87
    %v277 = vunpack.c.l.b16 %v88
    %v278 = vunpack.c.h.b16 %v88
    %v279 = vunpack.c.l.b16 %v89
    %v280 = vunpack.c.h.b16 %v89
    %v281 = vunpack.c.l.b16 %v90
    %v282 = vunpack.c.h.b16 %v90
    %v283 = vunpack.c.l.b16 %v91
    %v284 = vunpack.c.h.b16 %v91
    %v285 = vunpack.c.l.b16 %v92
    %v286 = vunpack.c.h.b16 %v92
    %v287 = vunpack.c.l.b16 %v93
    %v288 = vunpack.c.h.b16 %v93
    %v289 = vunpack.c.l.b16 %v94
    %v290 = vunpack.c.h.b16 %v94
    %v291 = vunpack.c.l.b16 %v95
    %v292 = vunpack.c.h.b16 %v95
    %v293 = vunpack.c.l.b16 %v96
    %v294 = vunpack.c.h.b16 %v96
    %v295 = vunpack.c.l.b16 %v97
    %v296 = vunpack.c.h.b16 %v97
    %v297 = vunpack.c.l.b16 %v98
    %v298 = vunpack.c.h.b16 %v98
    %v299 = vunpack.c.l.b16 %v99
    %v300 = vunpack.c.h.b16 %v99
    %v301 = vunpack.c.l.b16 %v100
    %v302 = vunpack.c.h.b16 %v100
    %v303 = vunpack.c.l.b16 %v101
    %v304 = vunpack.c.h.b16 %v101
    %v305 = vunpack.c.l.b16 %v102
    %v306 = vunpack.c.h.b16 %v102
    %v307 = vunpack.c.l.b16 %v103
    %v308 = vunpack.c.h.b16 %v103
    %v309 = vunpack.c.l.b16 %v104
    %v310 = vunpack.c.h.b16 %v104
    %v311 = vunpack.c.l.b16 %v105
    %v312 = vunpack.c.h.b16 %v105
    %v313 = vunpack.c.l.b16 %v106
    %v314 = vunpack.c.h.b16 %v106
    %v315 = vunpack.c.l.b16 %v107
    %v316 = vunpack.c.h.b16 %v107
    %v317 = vunpack.c.l.b16 %v108
    %v318 = vunpack.c.h.b16 %v108
    %v319 = vunpack.c.l.b16 %v109
    %v320 = vunpack.c.h.b16 %v109
    %v321 = vunpack.c.l.b16 %v110
    %v322 = vunpack.c.h.b16 %v110
    %v323 = vunpack.c.l.b16 %v111
    %v324 = vunpack.c.h.b16 %v111
    %v325 = vunpack.c.l.b16 %v112
    %v326 = vunpack.c.h.b16 %v112
    %v327 = vunpack.c.l.b16 %v113
    %v328 = vunpack.c.h.b16 %v113
    %v329 = vunpack.c.l.b16 %v114
    %v330 = vunpack.c.h.b16 %v114
    %v331 = vunpack.c.l.b16 %v115
    %v332 = vunpack.c.h.b16 %v115
    %v333 = vunpack.c.l.b16 %v116
    %v334 = vunpack.c.h.b16 %v116
    %v335 = vunpack.c.l.b16 %v117
    %v336 = vunpack.c.h.b16 %v117
    %v337 = vunpack.c.l.b16 %v118
    %v338 = vunpack.c.h.b16 %v118
    %v339 = vunpack.c.l.b16 %v119
    %v340 = vunpack.c.h.b16 %v119
    %v341 = vunpack.c.l.b16 %v120
    %v342 = vunpack.c.h.b16 %v120
    %v343 = vunpack.c.l.b16 %v121
    %v344 = vunpack.c.h.b16 %v121
    %v345 = vunpack.c.l.b16 %v122
    %v346 = vunpack.c.h.b16 %v122
    %v347 = vunpack.c.l.b16 %v123
    %v348 = vunpack.c.h.b16 %v123
    %v349 = vunpack.c.l.b16 %v124
    %v350 = vunpack.c.h.b16 %v124
    %v351 = vunpack.c.l.b16 %v125
    %v352 = vunpack.c.h.b16 %v125
    %v353 = vunpack.c.l.b16 %v126
    %v354 = vunpack.c.h.b16 %v126
    %v355 = vunpack.c.l.b16 %v127
    %v356 = vunpack.c.h.b16 %v127
    %v357 = vunpack.c.l.b16 %v128
    %v358 = vunpack.c.h.b16 %v128
    %v359 = vunpack.c.l.b16 %v129
    %v360 = vunpack.c.h.b16 %v129
    %v361 = vunpack.c.l.b16 %v130
    %v362 = vunpack.c.h.b16 %v130
    %v363 = vunpack.c.l.b16 %v131
    %v364 = vunpack.c.h.b16 %v131
    %v365 = vunpack.c.l.b16 %v132
    %v366 = vunpack.c.h.b16 %v132
    %v367 = vpack.c.b16 %v247, %v239
    %v368 = vpack.c.b16 %v248, %v240
    %v369 = vpack.c.b16 %v249, %v241
    %v370 = vpack.c.b16 %v250, %v242
    %v371 = vpack.c.b16 %v251, %v243
    %v372 = vpack.c.b16 %v252, %v244
    %v373 = vpack.c.b16 %v253, %v245
    %v374 = vpack.c.b16 %v254, %v246
    %v375 = vpack.c.b16 %v263, %v255
    %v376 = vpack.c.b16 %v264, %v256
    %v377 = vpack.c.b16 %v265, %v257
    %v378 = vpack.c.b16 %v266, %v258
    %v379 = vpack.c.b16 %v267, %v259
    %v380 = vpack.c.b16 %v268, %v260
    %v381 = vpack.c.b16 %v269, %v261
    %v382 = vpack.c.b16 %v270, %v262
    %v383 = vpack.c.b16 %v279, %v271
    %v384 = vpack.c.b16 %v280, %v272
    %v385 = vpack.c.b16 %v281, %v273
    %v386 = vpack.c.b16 %v282, %v274
    %v387 = vpack.c.b16 %v283, %v275
    %v388 = vpack.c.b16 %v284, %v276
    %v389 = vpack.c.b16 %v285, %v277
    %v390 = vpack.c.b16 %v286, %v278
    %v391 = vpack.c.b16 %v295, %v287
    %v392 = vpack.c.b16 %v296, %v288
    %v393 = vpack.c.b16 %v297, %v289
    %v394 = vpack.c.b16 %v298, %v290
    %v395 = vpack.c.b16 %v299, %v291
    %v396 = vpack.c.b16 %v300, %v292
    %v397 = vpack.c.b16 %v301, %v293
    %v398 = vpack.c.b16 %v302, %v294
    %v399 = vpack.c.b16 %v311, %v303
    %v400 = vpack.c.b16 %v312, %v304
    %v401 = vpack.c.b16 %v313, %v305
    %v402 = vpack.c.b16 %v314, %v306
    %v403 = vpack.c.b16 %v315, %v307
    %v404 = vpack.c.b16 %v316, %v308
    %v405 = vpack.c.b16 %v317, %v309
    %v406 = vpack.c.b16 %v318, %v310
    %v407 = vpack.c.b16 %v327, %v319
    %v408 = vpack.c.b16 %v328, %v320
    %v409 = vpack.c.b16 %v329, %v321
    %v410 = vpack.c.b16 %v330, %v322
    %v411 = vpack.c.b16 %v331, %v323
    %v412 = vpack.c.b16 %v332, %v324
    %v413 = vpack.c.b16 %v333, %v325
    %v414 = vpack.c.b16 %v334, %v326
    %v415 = vpack.c.b16 %v343, %v335
    %v416 = vpack.c.b16 %v344, %v336
    %v417 = vpack.c.b16 %v345, %v337
    %v418 = vpack.c.b16 %v346, %v338
    %v419 = vpack.c.b16 %v347, %v339
    %v420 = vpack.c.b16 %v348, %v340
    %v421 = vpack.c.b16 %v349, %v341
    %v422 = vpack.c.b16 %v350, %v342
    %v423 = vpack.c.b16 %v359, %v351
    %v424 = vpack.c.b16 %v360, %v352
    %v425 = vpack.c.b16 %v361, %v353
    %v426 = vpack.c.b16 %v362, %v354
    %v427 = vpack.c.b16 %v363, %v355
    %v428 = vpack.c.b16 %v364, %v356
    %v429 = vpack.c.b16 %v365, %v357
    %v430 = vpack.c.b16 %v366, %v358
    %495 = vmatprep.subr.bf16.mxu0 %v424
    %496 = vmatpush1.bf16.msra.mxu0 %v423
    %497 = vmatprep.subr.bf16.mxu0 %v416
    %498 = vmatpush1.bf16.msra.mxu0 %v415
    %499 = vmatprep.subr.bf16.mxu0 %v408
    %500 = vmatpush1.bf16.msra.mxu0 %v407
    %501 = vmatprep.subr.bf16.mxu0 %v400
    %502 = vmatpush1.bf16.msra.mxu0 %v399
    %503 = vmatprep.subr.bf16.mxu0 %v392
    %504 = vmatpush1.bf16.msra.mxu0 %v391
    %505 = vmatprep.subr.bf16.mxu0 %v384
    %506 = vmatpush1.bf16.msra.mxu0 %v383
    %507 = vmatprep.subr.bf16.mxu0 %v376
    %508 = vmatpush1.bf16.msra.mxu0 %v375
    %509 = vmatprep.subr.bf16.mxu0 %v368
    %510 = vmatpush1.bf16.msra.mxu0 %v367
    %511 = vmatprep.subr.bf16.mxu0 0
    %512 = vmatpush2.bf16.msra.mxu0 0
    %513 = vmatprep.subr.bf16.mxu0 0
    %514 = vmatpush2.bf16.msra.mxu0 0
    %515 = vmatprep.subr.bf16.mxu0 0
    %516 = vmatpush2.bf16.msra.mxu0 0
    %517 = vmatprep.subr.bf16.mxu0 0
    %518 = vmatpush2.bf16.msra.mxu0 0
    %519 = vmatprep.subr.bf16.mxu0 0
    %520 = vmatpush2.bf16.msra.mxu0 0
    %521 = vmatprep.subr.bf16.mxu0 0
    %522 = vmatpush2.bf16.msra.mxu0 0
    %523 = vmatprep.subr.bf16.mxu0 0
    %524 = vmatpush2.bf16.msra.mxu0 0
    %525 = vmatprep.subr.bf16.mxu0 0
    %526 = vmatpush2.bf16.msra.mxu0 0
    %527 = vmatprep.mubr.bf16.mxu0 0
    %528 = vmatmul.mubr.bf16.gmra.mxu0 %v68
    %v529 = vpop.f32.mrf.mxu0
    %v530 = vadd.f32 %v138, %v529
    %v531 = vpop.f32.mrf.mxu0
    %v532 = vadd.f32 %v142, %v531
    %v533 = vpop.f32.mrf.mxu0
    %v534 = vpop.f32.mrf.mxu0
    %535 = vdwg.mxu0
    %536 = vmatprep.subr.bf16.mxu0 %v426
    %537 = vmatpush1.bf16.msra.mxu0 %v425
    %538 = vmatprep.subr.bf16.mxu0 %v418
    %539 = vmatpush1.bf16.msra.mxu0 %v417
    %540 = vmatprep.subr.bf16.mxu0 %v410
    %541 = vmatpush1.bf16.msra.mxu0 %v409
    %542 = vmatprep.subr.bf16.mxu0 %v402
    %543 = vmatpush1.bf16.msra.mxu0 %v401
    %544 = vmatprep.subr.bf16.mxu0 %v394
    %545 = vmatpush1.bf16.msra.mxu0 %v393
    %546 = vmatprep.subr.bf16.mxu0 %v386
    %547 = vmatpush1.bf16.msra.mxu0 %v385
    %548 = vmatprep.subr.bf16.mxu0 %v378
    %549 = vmatpush1.bf16.msra.mxu0 %v377
    %550 = vmatprep.subr.bf16.mxu0 %v370
    %551 = vmatpush1.bf16.msra.mxu0 %v369
    %552 = vmatprep.subr.bf16.mxu0 0
    %553 = vmatpush2.bf16.msra.mxu0 0
    %554 = vmatprep.subr.bf16.mxu0 0
    %555 = vmatpush2.bf16.msra.mxu0 0
    %556 = vmatprep.subr.bf16.mxu0 0
    %557 = vmatpush2.bf16.msra.mxu0 0
    %558 = vmatprep.subr.bf16.mxu0 0
    %559 = vmatpush2.bf16.msra.mxu0 0
    %560 = vmatprep.subr.bf16.mxu0 0
    %561 = vmatpush2.bf16.msra.mxu0 0
    %562 = vmatprep.subr.bf16.mxu0 0
    %563 = vmatpush2.bf16.msra.mxu0 0
    %564 = vmatprep.subr.bf16.mxu0 0
    %565 = vmatpush2.bf16.msra.mxu0 0
    %566 = vmatprep.subr.bf16.mxu0 0
    %567 = vmatpush2.bf16.msra.mxu0 0
    %568 = vmatprep.mubr.bf16.mxu0 0
    %569 = vmatmul.mubr.bf16.gmra.mxu0 %v68
    %v570 = vpop.f32.mrf.mxu0
    %v571 = vadd.f32 %v146, %v570
    %v572 = vpop.f32.mrf.mxu0
    %v573 = vadd.f32 %v150, %v572
    %v574 = vpop.f32.mrf.mxu0
    %v575 = vpop.f32.mrf.mxu0
    %576 = vdwg.mxu0
    %577 = vmatprep.subr.bf16.mxu0 %v428
    %578 = vmatpush1.bf16.msra.mxu0 %v427
    %579 = vmatprep.subr.bf16.mxu0 %v420
    %580 = vmatpush1.bf16.msra.mxu0 %v419
    %581 = vmatprep.subr.bf16.mxu0 %v412
    %582 = vmatpush1.bf16.msra.mxu0 %v411
    %583 = vmatprep.subr.bf16.mxu0 %v404
    %584 = vmatpush1.bf16.msra.mxu0 %v403
    %585 = vmatprep.subr.bf16.mxu0 %v396
    %586 = vmatpush1.bf16.msra.mxu0 %v395
    %587 = vmatprep.subr.bf16.mxu0 %v388
    %588 = vmatpush1.bf16.msra.mxu0 %v387
    %589 = vmatprep.subr.bf16.mxu0 %v380
    %590 = vmatpush1.bf16.msra.mxu0 %v379
    %591 = vmatprep.subr.bf16.mxu0 %v372
    %592 = vmatpush1.bf16.msra.mxu0 %v371
    %593 = vmatprep.subr.bf16.mxu0 0
    %594 = vmatpush2.bf16.msra.mxu0 0
    %595 = vmatprep.subr.bf16.mxu0 0
    %596 = vmatpush2.bf16.msra.mxu0 0
    %597 = vmatprep.subr.bf16.mxu0 0
    %598 = vmatpush2.bf16.msra.mxu0 0
    %599 = vmatprep.subr.bf16.mxu0 0
    %600 = vmatpush2.bf16.msra.mxu0 0
    %601 = vmatprep.subr.bf16.mxu0 0
    %602 = vmatpush2.bf16.msra.mxu0 0
    %603 = vmatprep.subr.bf16.mxu0 0
    %604 = vmatpush2.bf16.msra.mxu0 0
    %605 = vmatprep.subr.bf16.mxu0 0
    %606 = vmatpush2.bf16.msra.mxu0 0
    %607 = vmatprep.subr.bf16.mxu0 0
    %608 = vmatpush2.bf16.msra.mxu0 0
    %609 = vmatprep.mubr.bf16.mxu0 0
    %610 = vmatmul.mubr.bf16.gmra.mxu0 %v68
    %v611 = vpop.f32.mrf.mxu0
    %v612 = vadd.f32 %v154, %v611
    %v613 = vpop.f32.mrf.mxu0
    %v614 = vadd.f32 %v158, %v613
    %v615 = vpop.f32.mrf.mxu0
    %v616 = vpop.f32.mrf.mxu0
    %617 = vdwg.mxu0
    %618 = vmatprep.subr.bf16.mxu0 %v430
    %619 = vmatpush1.bf16.msra.mxu0 %v429
    %620 = vmatprep.subr.bf16.mxu0 %v422
    %621 = vmatpush1.bf16.msra.mxu0 %v421
    %622 = vmatprep.subr.bf16.mxu0 %v414
    %623 = vmatpush1.bf16.msra.mxu0 %v413
    %624 = vmatprep.subr.bf16.mxu0 %v406
    %625 = vmatpush1.bf16.msra.mxu0 %v405
    %626 = vmatprep.subr.bf16.mxu0 %v398
    %627 = vmatpush1.bf16.msra.mxu0 %v397
    %628 = vmatprep.subr.bf16.mxu0 %v390
    %629 = vmatpush1.bf16.msra.mxu0 %v389
    %630 = vmatprep.subr.bf16.mxu0 %v382
    %631 = vmatpush1.bf16.msra.mxu0 %v381
    %632 = vmatprep.subr.bf16.mxu0 %v374
    %633 = vmatpush1.bf16.msra.mxu0 %v373
    %634 = vmatprep.subr.bf16.mxu0 0
    %635 = vmatpush2.bf16.msra.mxu0 0
    %636 = vmatprep.subr.bf16.mxu0 0
    %637 = vmatpush2.bf16.msra.mxu0 0
    %638 = vmatprep.subr.bf16.mxu0 0
    %639 = vmatpush2.bf16.msra.mxu0 0
    %640 = vmatprep.subr.bf16.mxu0 0
    %641 = vmatpush2.bf16.msra.mxu0 0
    %642 = vmatprep.subr.bf16.mxu0 0
    %643 = vmatpush2.bf16.msra.mxu0 0
    %644 = vmatprep.subr.bf16.mxu0 0
    %645 = vmatpush2.bf16.msra.mxu0 0
    %646 = vmatprep.subr.bf16.mxu0 0
    %647 = vmatpush2.bf16.msra.mxu0 0
    %648 = vmatprep.subr.bf16.mxu0 0
    %649 = vmatpush2.bf16.msra.mxu0 0
    %650 = vmatprep.mubr.bf16.mxu0 0
    %651 = vmatmul.mubr.bf16.gmra.mxu0 %v68
    %v652 = vpop.f32.mrf.mxu0
    %v653 = vadd.f32 %v162, %v652
    %v654 = vpop.f32.mrf.mxu0
    %v655 = vadd.f32 %v166, %v654
    %v656 = vpop.f32.mrf.mxu0
    %v657 = vpop.f32.mrf.mxu0
    %658 = vdwg.mxu0
    %v659 = vmax.f32 %v530, 0.0
    %v660 = vmax.f32 %v532, 0.0
    %v661 = vmax.f32 %v571, 0.0
    %v662 = vmax.f32 %v573, 0.0
    %v663 = vmax.f32 %v612, 0.0
    %v664 = vmax.f32 %v614, 0.0
    %v665 = vmax.f32 %v653, 0.0
    %v666 = vmax.f32 %v655, 0.0
    %v667 = vpack.c.bf16 %v659, %v659
    %v668 = vpack.c.bf16 %v660, %v660
    %v669 = vpack.c.bf16 %v661, %v661
    %v670 = vpack.c.bf16 %v662, %v662
    %v671 = vpack.c.bf16 %v663, %v663
    %v672 = vpack.c.bf16 %v664, %v664
    %v673 = vpack.c.bf16 %v665, %v665
    %v674 = vpack.c.bf16 %v666, %v666
    %v675 = vld [vmem:[#allocation4] sm:$0xff]
    %v676 = vld [vmem:[#allocation4 + $0x8] sm:$0xff]
    %v677 = vld [vmem:[#allocation4 + $0x10] sm:$0xff]
    %v678 = vld [vmem:[#allocation4 + $0x18] sm:$0xff]
    %v679 = vld [vmem:[#allocation4 + $0x20] sm:$0xff]
    %v680 = vld [vmem:[#allocation4 + $0x28] sm:$0xff]
    %v681 = vld [vmem:[#allocation4 + $0x30] sm:$0xff]
    %v682 = vld [vmem:[#allocation4 + $0x38] sm:$0xff]
    %v683 = vld [vmem:[#allocation4 + $0x40] sm:$0xff]
    %v684 = vld [vmem:[#allocation4 + $0x48] sm:$0xff]
    %v685 = vld [vmem:[#allocation4 + $0x50] sm:$0xff]
    %v686 = vld [vmem:[#allocation4 + $0x58] sm:$0xff]
    %v687 = vld [vmem:[#allocation4 + $0x60] sm:$0xff]
    %v688 = vld [vmem:[#allocation4 + $0x68] sm:$0xff]
    %v689 = vld [vmem:[#allocation4 + $0x70] sm:$0xff]
    %v690 = vld [vmem:[#allocation4 + $0x78] sm:$0xff]
    %v691 = vld [vmem:[#allocation4 + $0x80] sm:$0xff]
    %v692 = vld [vmem:[#allocation4 + $0x88] sm:$0xff]
    %v693 = vld [vmem:[#allocation4 + $0x90] sm:$0xff]
    %v694 = vld [vmem:[#allocation4 + $0x98] sm:$0xff]
    %v695 = vld [vmem:[#allocation4 + $0xa0] sm:$0xff]
    %v696 = vld [vmem:[#allocation4 + $0xa8] sm:$0xff]
    %v697 = vld [vmem:[#allocation4 + $0xb0] sm:$0xff]
    %v698 = vld [vmem:[#allocation4 + $0xb8] sm:$0xff]
    %v699 = vld [vmem:[#allocation4 + $0xc0] sm:$0xff]
    %v700 = vld [vmem:[#allocation4 + $0xc8] sm:$0xff]
    %v701 = vld [vmem:[#allocation4 + $0xd0] sm:$0xff]
    %v702 = vld [vmem:[#allocation4 + $0xd8] sm:$0xff]
    %v703 = vld [vmem:[#allocation4 + $0xe0] sm:$0xff]
    %v704 = vld [vmem:[#allocation4 + $0xe8] sm:$0xff]
    %v705 = vld [vmem:[#allocation4 + $0xf0] sm:$0xff]
    %v706 = vld [vmem:[#allocation4 + $0xf8] sm:$0xff]
    %v707 = vld [vmem:[#allocation4 + $0x100] sm:$0xff]
    %v708 = vld [vmem:[#allocation4 + $0x108] sm:$0xff]
    %v709 = vld [vmem:[#allocation4 + $0x110] sm:$0xff]
    %v710 = vld [vmem:[#allocation4 + $0x118] sm:$0xff]
    %v711 = vld [vmem:[#allocation4 + $0x120] sm:$0xff]
    %v712 = vld [vmem:[#allocation4 + $0x128] sm:$0xff]
    %v713 = vld [vmem:[#allocation4 + $0x130] sm:$0xff]
    %v714 = vld [vmem:[#allocation4 + $0x138] sm:$0xff]
    %v715 = vld [vmem:[#allocation4 + $0x140] sm:$0xff]
    %v716 = vld [vmem:[#allocation4 + $0x148] sm:$0xff]
    %v717 = vld [vmem:[#allocation4 + $0x150] sm:$0xff]
    %v718 = vld [vmem:[#allocation4 + $0x158] sm:$0xff]
    %v719 = vld [vmem:[#allocation4 + $0x160] sm:$0xff]
    %v720 = vld [vmem:[#allocation4 + $0x168] sm:$0xff]
    %v721 = vld [vmem:[#allocation4 + $0x170] sm:$0xff]
    %v722 = vld [vmem:[#allocation4 + $0x178] sm:$0xff]
    %v723 = vld [vmem:[#allocation4 + $0x180] sm:$0xff]
    %v724 = vld [vmem:[#allocation4 + $0x188] sm:$0xff]
    %v725 = vld [vmem:[#allocation4 + $0x190] sm:$0xff]
    %v726 = vld [vmem:[#allocation4 + $0x198] sm:$0xff]
    %v727 = vld [vmem:[#allocation4 + $0x1a0] sm:$0xff]
    %v728 = vld [vmem:[#allocation4 + $0x1a8] sm:$0xff]
    %v729 = vld [vmem:[#allocation4 + $0x1b0] sm:$0xff]
    %v730 = vld [vmem:[#allocation4 + $0x1b8] sm:$0xff]
    %v731 = vld [vmem:[#allocation4 + $0x1c0] sm:$0xff]
    %v732 = vld [vmem:[#allocation4 + $0x1c8] sm:$0xff]
    %v733 = vld [vmem:[#allocation4 + $0x1d0] sm:$0xff]
    %v734 = vld [vmem:[#allocation4 + $0x1d8] sm:$0xff]
    %v735 = vld [vmem:[#allocation4 + $0x1e0] sm:$0xff]
    %v736 = vld [vmem:[#allocation4 + $0x1e8] sm:$0xff]
    %v737 = vld [vmem:[#allocation4 + $0x1f0] sm:$0xff]
    %v738 = vld [vmem:[#allocation4 + $0x1f8] sm:$0xff]
    %v739 = vld [vmem:[#allocation4 + $0x200] sm:$0xff]
    %v740 = vld [vmem:[#allocation4 + $0x208] sm:$0xff]
    %v741 = vld [vmem:[#allocation4 + $0x210] sm:$0xff]
    %v742 = vld [vmem:[#allocation4 + $0x218] sm:$0xff]
    %v743 = vld [vmem:[#allocation4 + $0x220] sm:$0xff]
    %v744 = vld [vmem:[#allocation4 + $0x228] sm:$0xff]
    %v745 = vld [vmem:[#allocation4 + $0x230] sm:$0xff]
    %v746 = vld [vmem:[#allocation4 + $0x238] sm:$0xff]
    %v747 = vld [vmem:[#allocation4 + $0x240] sm:$0xff]
    %v748 = vld [vmem:[#allocation4 + $0x248] sm:$0xff]
    %v749 = vld [vmem:[#allocation4 + $0x250] sm:$0xff]
    %v750 = vld [vmem:[#allocation4 + $0x258] sm:$0xff]
    %v751 = vld [vmem:[#allocation4 + $0x260] sm:$0xff]
    %v752 = vld [vmem:[#allocation4 + $0x268] sm:$0xff]
    %v753 = vld [vmem:[#allocation4 + $0x270] sm:$0xff]
    %v754 = vld [vmem:[#allocation4 + $0x278] sm:$0xff]
    %v755 = vld [vmem:[#allocation4 + $0x280] sm:$0xff]
    %v756 = vld [vmem:[#allocation4 + $0x288] sm:$0xff]
    %v757 = vld [vmem:[#allocation4 + $0x290] sm:$0xff]
    %v758 = vld [vmem:[#allocation4 + $0x298] sm:$0xff]
    %v759 = vld [vmem:[#allocation4 + $0x2a0] sm:$0xff]
    %v760 = vld [vmem:[#allocation4 + $0x2a8] sm:$0xff]
    %v761 = vld [vmem:[#allocation4 + $0x2b0] sm:$0xff]
    %v762 = vld [vmem:[#allocation4 + $0x2b8] sm:$0xff]
    %v763 = vld [vmem:[#allocation4 + $0x2c0] sm:$0xff]
    %v764 = vld [vmem:[#allocation4 + $0x2c8] sm:$0xff]
    %v765 = vld [vmem:[#allocation4 + $0x2d0] sm:$0xff]
    %v766 = vld [vmem:[#allocation4 + $0x2d8] sm:$0xff]
    %v767 = vld [vmem:[#allocation4 + $0x2e0] sm:$0xff]
    %v768 = vld [vmem:[#allocation4 + $0x2e8] sm:$0xff]
    %v769 = vld [vmem:[#allocation4 + $0x2f0] sm:$0xff]
    %v770 = vld [vmem:[#allocation4 + $0x2f8] sm:$0xff]
    %v771 = vld [vmem:[#allocation4 + $0x300] sm:$0xff]
    %v772 = vld [vmem:[#allocation4 + $0x308] sm:$0xff]
    %v773 = vld [vmem:[#allocation4 + $0x310] sm:$0xff]
    %v774 = vld [vmem:[#allocation4 + $0x318] sm:$0xff]
    %v775 = vld [vmem:[#allocation4 + $0x320] sm:$0xff]
    %v776 = vld [vmem:[#allocation4 + $0x328] sm:$0xff]
    %v777 = vld [vmem:[#allocation4 + $0x330] sm:$0xff]
    %v778 = vld [vmem:[#allocation4 + $0x338] sm:$0xff]
    %v779 = vld [vmem:[#allocation4 + $0x340] sm:$0xff]
    %v780 = vld [vmem:[#allocation4 + $0x348] sm:$0xff]
    %v781 = vld [vmem:[#allocation4 + $0x350] sm:$0xff]
    %v782 = vld [vmem:[#allocation4 + $0x358] sm:$0xff]
    %v783 = vld [vmem:[#allocation4 + $0x360] sm:$0xff]
    %v784 = vld [vmem:[#allocation4 + $0x368] sm:$0xff]
    %v785 = vld [vmem:[#allocation4 + $0x370] sm:$0xff]
    %v786 = vld [vmem:[#allocation4 + $0x378] sm:$0xff]
    %v787 = vld [vmem:[#allocation4 + $0x380] sm:$0xff]
    %v788 = vld [vmem:[#allocation4 + $0x388] sm:$0xff]
    %v789 = vld [vmem:[#allocation4 + $0x390] sm:$0xff]
    %v790 = vld [vmem:[#allocation4 + $0x398] sm:$0xff]
    %v791 = vld [vmem:[#allocation4 + $0x3a0] sm:$0xff]
    %v792 = vld [vmem:[#allocation4 + $0x3a8] sm:$0xff]
    %v793 = vld [vmem:[#allocation4 + $0x3b0] sm:$0xff]
    %v794 = vld [vmem:[#allocation4 + $0x3b8] sm:$0xff]
    %v795 = vld [vmem:[#allocation4 + $0x3c0] sm:$0xff]
    %v796 = vld [vmem:[#allocation4 + $0x3c8] sm:$0xff]
    %v797 = vld [vmem:[#allocation4 + $0x3d0] sm:$0xff]
    %v798 = vld [vmem:[#allocation4 + $0x3d8] sm:$0xff]
    %v799 = vld [vmem:[#allocation4 + $0x3e0] sm:$0xff]
    %v800 = vld [vmem:[#allocation4 + $0x3e8] sm:$0xff]
    %v801 = vld [vmem:[#allocation4 + $0x3f0] sm:$0xff]
    %v802 = vld [vmem:[#allocation4 + $0x3f8] sm:$0xff]
    %v803 = vld [vmem:[#allocation4 + $0x400] sm:$0xff]
    %v804 = vld [vmem:[#allocation4 + $0x408] sm:$0xff]
    %v805 = vld [vmem:[#allocation4 + $0x410] sm:$0xff]
    %v806 = vld [vmem:[#allocation4 + $0x418] sm:$0xff]
    %v807 = vld [vmem:[#allocation4 + $0x420] sm:$0xff]
    %v808 = vld [vmem:[#allocation4 + $0x428] sm:$0xff]
    %v809 = vld [vmem:[#allocation4 + $0x430] sm:$0xff]
    %v810 = vld [vmem:[#allocation4 + $0x438] sm:$0xff]
    %v811 = vld [vmem:[#allocation4 + $0x440] sm:$0xff]
    %v812 = vld [vmem:[#allocation4 + $0x448] sm:$0xff]
    %v813 = vld [vmem:[#allocation4 + $0x450] sm:$0xff]
    %v814 = vld [vmem:[#allocation4 + $0x458] sm:$0xff]
    %v815 = vld [vmem:[#allocation4 + $0x460] sm:$0xff]
    %v816 = vld [vmem:[#allocation4 + $0x468] sm:$0xff]
    %v817 = vld [vmem:[#allocation4 + $0x470] sm:$0xff]
    %v818 = vld [vmem:[#allocation4 + $0x478] sm:$0xff]
    %v819 = vld [vmem:[#allocation4 + $0x480] sm:$0xff]
    %v820 = vld [vmem:[#allocation4 + $0x488] sm:$0xff]
    %v821 = vld [vmem:[#allocation4 + $0x490] sm:$0xff]
    %v822 = vld [vmem:[#allocation4 + $0x498] sm:$0xff]
    %v823 = vld [vmem:[#allocation4 + $0x4a0] sm:$0xff]
    %v824 = vld [vmem:[#allocation4 + $0x4a8] sm:$0xff]
    %v825 = vld [vmem:[#allocation4 + $0x4b0] sm:$0xff]
    %v826 = vld [vmem:[#allocation4 + $0x4b8] sm:$0xff]
    %v827 = vld [vmem:[#allocation4 + $0x4c0] sm:$0xff]
    %v828 = vld [vmem:[#allocation4 + $0x4c8] sm:$0xff]
    %v829 = vld [vmem:[#allocation4 + $0x4d0] sm:$0xff]
    %v830 = vld [vmem:[#allocation4 + $0x4d8] sm:$0xff]
    %v831 = vld [vmem:[#allocation4 + $0x4e0] sm:$0xff]
    %v832 = vld [vmem:[#allocation4 + $0x4e8] sm:$0xff]
    %v833 = vld [vmem:[#allocation4 + $0x4f0] sm:$0xff]
    %v834 = vld [vmem:[#allocation4 + $0x4f8] sm:$0xff]
    %v835 = vld [vmem:[#allocation4 + $0x500] sm:$0xff]
    %v836 = vld [vmem:[#allocation4 + $0x508] sm:$0xff]
    %v837 = vld [vmem:[#allocation4 + $0x510] sm:$0xff]
    %v838 = vld [vmem:[#allocation4 + $0x518] sm:$0xff]
    %v839 = vld [vmem:[#allocation4 + $0x520] sm:$0xff]
    %v840 = vld [vmem:[#allocation4 + $0x528] sm:$0xff]
    %v841 = vld [vmem:[#allocation4 + $0x530] sm:$0xff]
    %v842 = vld [vmem:[#allocation4 + $0x538] sm:$0xff]
    %v843 = vld [vmem:[#allocation4 + $0x540] sm:$0xff]
    %v844 = vld [vmem:[#allocation4 + $0x548] sm:$0xff]
    %v845 = vld [vmem:[#allocation4 + $0x550] sm:$0xff]
    %v846 = vld [vmem:[#allocation4 + $0x558] sm:$0xff]
    %v847 = vld [vmem:[#allocation4 + $0x560] sm:$0xff]
    %v848 = vld [vmem:[#allocation4 + $0x568] sm:$0xff]
    %v849 = vld [vmem:[#allocation4 + $0x570] sm:$0xff]
    %v850 = vld [vmem:[#allocation4 + $0x578] sm:$0xff]
    %v851 = vld [vmem:[#allocation4 + $0x580] sm:$0xff]
    %v852 = vld [vmem:[#allocation4 + $0x588] sm:$0xff]
    %v853 = vld [vmem:[#allocation4 + $0x590] sm:$0xff]
    %v854 = vld [vmem:[#allocation4 + $0x598] sm:$0xff]
    %v855 = vld [vmem:[#allocation4 + $0x5a0] sm:$0xff]
    %v856 = vld [vmem:[#allocation4 + $0x5a8] sm:$0xff]
    %v857 = vld [vmem:[#allocation4 + $0x5b0] sm:$0xff]
    %v858 = vld [vmem:[#allocation4 + $0x5b8] sm:$0xff]
    %v859 = vld [vmem:[#allocation4 + $0x5c0] sm:$0xff]
    %v860 = vld [vmem:[#allocation4 + $0x5c8] sm:$0xff]
    %v861 = vld [vmem:[#allocation4 + $0x5d0] sm:$0xff]
    %v862 = vld [vmem:[#allocation4 + $0x5d8] sm:$0xff]
    %v863 = vld [vmem:[#allocation4 + $0x5e0] sm:$0xff]
    %v864 = vld [vmem:[#allocation4 + $0x5e8] sm:$0xff]
    %v865 = vld [vmem:[#allocation4 + $0x5f0] sm:$0xff]
    %v866 = vld [vmem:[#allocation4 + $0x5f8] sm:$0xff]
    %v867 = vld [vmem:[#allocation4 + $0x600] sm:$0xff]
    %v868 = vld [vmem:[#allocation4 + $0x608] sm:$0xff]
    %v869 = vld [vmem:[#allocation4 + $0x610] sm:$0xff]
    %v870 = vld [vmem:[#allocation4 + $0x618] sm:$0xff]
    %v871 = vld [vmem:[#allocation4 + $0x620] sm:$0xff]
    %v872 = vld [vmem:[#allocation4 + $0x628] sm:$0xff]
    %v873 = vld [vmem:[#allocation4 + $0x630] sm:$0xff]
    %v874 = vld [vmem:[#allocation4 + $0x638] sm:$0xff]
    %v875 = vld [vmem:[#allocation4 + $0x640] sm:$0xff]
    %v876 = vld [vmem:[#allocation4 + $0x648] sm:$0xff]
    %v877 = vld [vmem:[#allocation4 + $0x650] sm:$0xff]
    %v878 = vld [vmem:[#allocation4 + $0x658] sm:$0xff]
    %v879 = vld [vmem:[#allocation4 + $0x660] sm:$0xff]
    %v880 = vld [vmem:[#allocation4 + $0x668] sm:$0xff]
    %v881 = vld [vmem:[#allocation4 + $0x670] sm:$0xff]
    %v882 = vld [vmem:[#allocation4 + $0x678] sm:$0xff]
    %v883 = vld [vmem:[#allocation4 + $0x680] sm:$0xff]
    %v884 = vld [vmem:[#allocation4 + $0x688] sm:$0xff]
    %v885 = vld [vmem:[#allocation4 + $0x690] sm:$0xff]
    %v886 = vld [vmem:[#allocation4 + $0x698] sm:$0xff]
    %v887 = vld [vmem:[#allocation4 + $0x6a0] sm:$0xff]
    %v888 = vld [vmem:[#allocation4 + $0x6a8] sm:$0xff]
    %v889 = vld [vmem:[#allocation4 + $0x6b0] sm:$0xff]
    %v890 = vld [vmem:[#allocation4 + $0x6b8] sm:$0xff]
    %v891 = vld [vmem:[#allocation4 + $0x6c0] sm:$0xff]
    %v892 = vld [vmem:[#allocation4 + $0x6c8] sm:$0xff]
    %v893 = vld [vmem:[#allocation4 + $0x6d0] sm:$0xff]
    %v894 = vld [vmem:[#allocation4 + $0x6d8] sm:$0xff]
    %v895 = vld [vmem:[#allocation4 + $0x6e0] sm:$0xff]
    %v896 = vld [vmem:[#allocation4 + $0x6e8] sm:$0xff]
    %v897 = vld [vmem:[#allocation4 + $0x6f0] sm:$0xff]
    %v898 = vld [vmem:[#allocation4 + $0x6f8] sm:$0xff]
    %v899 = vld [vmem:[#allocation4 + $0x700] sm:$0xff]
    %v900 = vld [vmem:[#allocation4 + $0x708] sm:$0xff]
    %v901 = vld [vmem:[#allocation4 + $0x710] sm:$0xff]
    %v902 = vld [vmem:[#allocation4 + $0x718] sm:$0xff]
    %v903 = vld [vmem:[#allocation4 + $0x720] sm:$0xff]
    %v904 = vld [vmem:[#allocation4 + $0x728] sm:$0xff]
    %v905 = vld [vmem:[#allocation4 + $0x730] sm:$0xff]
    %v906 = vld [vmem:[#allocation4 + $0x738] sm:$0xff]
    %v907 = vld [vmem:[#allocation4 + $0x740] sm:$0xff]
    %v908 = vld [vmem:[#allocation4 + $0x748] sm:$0xff]
    %v909 = vld [vmem:[#allocation4 + $0x750] sm:$0xff]
    %v910 = vld [vmem:[#allocation4 + $0x758] sm:$0xff]
    %v911 = vld [vmem:[#allocation4 + $0x760] sm:$0xff]
    %v912 = vld [vmem:[#allocation4 + $0x768] sm:$0xff]
    %v913 = vld [vmem:[#allocation4 + $0x770] sm:$0xff]
    %v914 = vld [vmem:[#allocation4 + $0x778] sm:$0xff]
    %v915 = vld [vmem:[#allocation4 + $0x780] sm:$0xff]
    %v916 = vld [vmem:[#allocation4 + $0x788] sm:$0xff]
    %v917 = vld [vmem:[#allocation4 + $0x790] sm:$0xff]
    %v918 = vld [vmem:[#allocation4 + $0x798] sm:$0xff]
    %v919 = vld [vmem:[#allocation4 + $0x7a0] sm:$0xff]
    %v920 = vld [vmem:[#allocation4 + $0x7a8] sm:$0xff]
    %v921 = vld [vmem:[#allocation4 + $0x7b0] sm:$0xff]
    %v922 = vld [vmem:[#allocation4 + $0x7b8] sm:$0xff]
    %v923 = vld [vmem:[#allocation4 + $0x7c0] sm:$0xff]
    %v924 = vld [vmem:[#allocation4 + $0x7c8] sm:$0xff]
    %v925 = vld [vmem:[#allocation4 + $0x7d0] sm:$0xff]
    %v926 = vld [vmem:[#allocation4 + $0x7d8] sm:$0xff]
    %v927 = vld [vmem:[#allocation4 + $0x7e0] sm:$0xff]
    %v928 = vld [vmem:[#allocation4 + $0x7e8] sm:$0xff]
    %v929 = vld [vmem:[#allocation4 + $0x7f0] sm:$0xff]
    %v930 = vld [vmem:[#allocation4 + $0x7f8] sm:$0xff]
    %v931 = vld [vmem:[%s4] sm:$0xf]
    %v933 = vlaneseq
    %v934 = vshrl.u32 %v933, 7
    %v935 = vsub.s32 0, %v934
    %v936 = vrot.slane %v931, %v935
    %v937 = vlaneseq
    %v938 = vshrl.u32 %v937, 7
    %v939 = vsub.s32 1, %v938
    %v940 = vrot.slane %v931, %v939
    %v941 = vlaneseq
    %v942 = vshrl.u32 %v941, 7
    %v943 = vsub.s32 2, %v942
    %v944 = vrot.slane %v931, %v943
    %v945 = vlaneseq
    %v946 = vshrl.u32 %v945, 7
    %v947 = vsub.s32 3, %v946
    %v948 = vrot.slane %v931, %v947
    %v1209 = vunpack.c.l.b16 %v675
    %v1210 = vunpack.c.h.b16 %v675
    %v1211 = vunpack.c.l.b16 %v676
    %v1212 = vunpack.c.h.b16 %v676
    %v1213 = vunpack.c.l.b16 %v677
    %v1214 = vunpack.c.h.b16 %v677
    %v1215 = vunpack.c.l.b16 %v678
    %v1216 = vunpack.c.h.b16 %v678
    %v1217 = vunpack.c.l.b16 %v679
    %v1218 = vunpack.c.h.b16 %v679
    %v1219 = vunpack.c.l.b16 %v680
    %v1220 = vunpack.c.h.b16 %v680
    %v1221 = vunpack.c.l.b16 %v681
    %v1222 = vunpack.c.h.b16 %v681
    %v1223 = vunpack.c.l.b16 %v682
    %v1224 = vunpack.c.h.b16 %v682
    %v1225 = vunpack.c.l.b16 %v683
    %v1226 = vunpack.c.h.b16 %v683
    %v1227 = vunpack.c.l.b16 %v684
    %v1228 = vunpack.c.h.b16 %v684
    %v1229 = vunpack.c.l.b16 %v685
    %v1230 = vunpack.c.h.b16 %v685
    %v1231 = vunpack.c.l.b16 %v686
    %v1232 = vunpack.c.h.b16 %v686
    %v1233 = vunpack.c.l.b16 %v687
    %v1234 = vunpack.c.h.b16 %v687
    %v1235 = vunpack.c.l.b16 %v688
    %v1236 = vunpack.c.h.b16 %v688
    %v1237 = vunpack.c.l.b16 %v689
    %v1238 = vunpack.c.h.b16 %v689
    %v1239 = vunpack.c.l.b16 %v690
    %v1240 = vunpack.c.h.b16 %v690
    %v1241 = vunpack.c.l.b16 %v691
    %v1242 = vunpack.c.h.b16 %v691
    %v1243 = vunpack.c.l.b16 %v692
    %v1244 = vunpack.c.h.b16 %v692
    %v1245 = vunpack.c.l.b16 %v693
    %v1246 = vunpack.c.h.b16 %v693
    %v1247 = vunpack.c.l.b16 %v694
    %v1248 = vunpack.c.h.b16 %v694
    %v1249 = vunpack.c.l.b16 %v695
    %v1250 = vunpack.c.h.b16 %v695
    %v1251 = vunpack.c.l.b16 %v696
    %v1252 = vunpack.c.h.b16 %v696
    %v1253 = vunpack.c.l.b16 %v697
    %v1254 = vunpack.c.h.b16 %v697
    %v1255 = vunpack.c.l.b16 %v698
    %v1256 = vunpack.c.h.b16 %v698
    %v1257 = vunpack.c.l.b16 %v699
    %v1258 = vunpack.c.h.b16 %v699
    %v1259 = vunpack.c.l.b16 %v700
    %v1260 = vunpack.c.h.b16 %v700
    %v1261 = vunpack.c.l.b16 %v701
    %v1262 = vunpack.c.h.b16 %v701
    %v1263 = vunpack.c.l.b16 %v702
    %v1264 = vunpack.c.h.b16 %v702
    %v1265 = vunpack.c.l.b16 %v703
    %v1266 = vunpack.c.h.b16 %v703
    %v1267 = vunpack.c.l.b16 %v704
    %v1268 = vunpack.c.h.b16 %v704
    %v1269 = vunpack.c.l.b16 %v705
    %v1270 = vunpack.c.h.b16 %v705
    %v1271 = vunpack.c.l.b16 %v706
    %v1272 = vunpack.c.h.b16 %v706
    %v1273 = vunpack.c.l.b16 %v707
    %v1274 = vunpack.c.h.b16 %v707
    %v1275 = vunpack.c.l.b16 %v708
    %v1276 = vunpack.c.h.b16 %v708
    %v1277 = vunpack.c.l.b16 %v709
    %v1278 = vunpack.c.h.b16 %v709
    %v1279 = vunpack.c.l.b16 %v710
    %v1280 = vunpack.c.h.b16 %v710
    %v1281 = vunpack.c.l.b16 %v711
    %v1282 = vunpack.c.h.b16 %v711
    %v1283 = vunpack.c.l.b16 %v712
    %v1284 = vunpack.c.h.b16 %v712
    %v1285 = vunpack.c.l.b16 %v713
    %v1286 = vunpack.c.h.b16 %v713
    %v1287 = vunpack.c.l.b16 %v714
    %v1288 = vunpack.c.h.b16 %v714
    %v1289 = vunpack.c.l.b16 %v715
    %v1290 = vunpack.c.h.b16 %v715
    %v1291 = vunpack.c.l.b16 %v716
    %v1292 = vunpack.c.h.b16 %v716
    %v1293 = vunpack.c.l.b16 %v717
    %v1294 = vunpack.c.h.b16 %v717
    %v1295 = vunpack.c.l.b16 %v718
    %v1296 = vunpack.c.h.b16 %v718
    %v1297 = vunpack.c.l.b16 %v719
    %v1298 = vunpack.c.h.b16 %v719
    %v1299 = vunpack.c.l.b16 %v720
    %v1300 = vunpack.c.h.b16 %v720
    %v1301 = vunpack.c.l.b16 %v721
    %v1302 = vunpack.c.h.b16 %v721
    %v1303 = vunpack.c.l.b16 %v722
    %v1304 = vunpack.c.h.b16 %v722
    %v1305 = vunpack.c.l.b16 %v723
    %v1306 = vunpack.c.h.b16 %v723
    %v1307 = vunpack.c.l.b16 %v724
    %v1308 = vunpack.c.h.b16 %v724
    %v1309 = vunpack.c.l.b16 %v725
    %v1310 = vunpack.c.h.b16 %v725
    %v1311 = vunpack.c.l.b16 %v726
    %v1312 = vunpack.c.h.b16 %v726
    %v1313 = vunpack.c.l.b16 %v727
    %v1314 = vunpack.c.h.b16 %v727
    %v1315 = vunpack.c.l.b16 %v728
    %v1316 = vunpack.c.h.b16 %v728
    %v1317 = vunpack.c.l.b16 %v729
    %v1318 = vunpack.c.h.b16 %v729
    %v1319 = vunpack.c.l.b16 %v730
    %v1320 = vunpack.c.h.b16 %v730
    %v1321 = vunpack.c.l.b16 %v731
    %v1322 = vunpack.c.h.b16 %v731
    %v1323 = vunpack.c.l.b16 %v732
    %v1324 = vunpack.c.h.b16 %v732
    %v1325 = vunpack.c.l.b16 %v733
    %v1326 = vunpack.c.h.b16 %v733
    %v1327 = vunpack.c.l.b16 %v734
    %v1328 = vunpack.c.h.b16 %v734
    %v1329 = vunpack.c.l.b16 %v735
    %v1330 = vunpack.c.h.b16 %v735
    %v1331 = vunpack.c.l.b16 %v736
    %v1332 = vunpack.c.h.b16 %v736
    %v1333 = vunpack.c.l.b16 %v737
    %v1334 = vunpack.c.h.b16 %v737
    %v1335 = vunpack.c.l.b16 %v738
    %v1336 = vunpack.c.h.b16 %v738
    %v1337 = vunpack.c.l.b16 %v739
    %v1338 = vunpack.c.h.b16 %v739
    %v1339 = vunpack.c.l.b16 %v740
    %v1340 = vunpack.c.h.b16 %v740
    %v1341 = vunpack.c.l.b16 %v741
    %v1342 = vunpack.c.h.b16 %v741
    %v1343 = vunpack.c.l.b16 %v742
    %v1344 = vunpack.c.h.b16 %v742
    %v1345 = vunpack.c.l.b16 %v743
    %v1346 = vunpack.c.h.b16 %v743
    %v1347 = vunpack.c.l.b16 %v744
    %v1348 = vunpack.c.h.b16 %v744
    %v1349 = vunpack.c.l.b16 %v745
    %v1350 = vunpack.c.h.b16 %v745
    %v1351 = vunpack.c.l.b16 %v746
    %v1352 = vunpack.c.h.b16 %v746
    %v1353 = vunpack.c.l.b16 %v747
    %v1354 = vunpack.c.h.b16 %v747
    %v1355 = vunpack.c.l.b16 %v748
    %v1356 = vunpack.c.h.b16 %v748
    %v1357 = vunpack.c.l.b16 %v749
    %v1358 = vunpack.c.h.b16 %v749
    %v1359 = vunpack.c.l.b16 %v750
    %v1360 = vunpack.c.h.b16 %v750
    %v1361 = vunpack.c.l.b16 %v751
    %v1362 = vunpack.c.h.b16 %v751
    %v1363 = vunpack.c.l.b16 %v752
    %v1364 = vunpack.c.h.b16 %v752
    %v1365 = vunpack.c.l.b16 %v753
    %v1366 = vunpack.c.h.b16 %v753
    %v1367 = vunpack.c.l.b16 %v754
    %v1368 = vunpack.c.h.b16 %v754
    %v1369 = vunpack.c.l.b16 %v755
    %v1370 = vunpack.c.h.b16 %v755
    %v1371 = vunpack.c.l.b16 %v756
    %v1372 = vunpack.c.h.b16 %v756
    %v1373 = vunpack.c.l.b16 %v757
    %v1374 = vunpack.c.h.b16 %v757
    %v1375 = vunpack.c.l.b16 %v758
    %v1376 = vunpack.c.h.b16 %v758
    %v1377 = vunpack.c.l.b16 %v759
    %v1378 = vunpack.c.h.b16 %v759
    %v1379 = vunpack.c.l.b16 %v760
    %v1380 = vunpack.c.h.b16 %v760
    %v1381 = vunpack.c.l.b16 %v761
    %v1382 = vunpack.c.h.b16 %v761
    %v1383 = vunpack.c.l.b16 %v762
    %v1384 = vunpack.c.h.b16 %v762
    %v1385 = vunpack.c.l.b16 %v763
    %v1386 = vunpack.c.h.b16 %v763
    %v1387 = vunpack.c.l.b16 %v764
    %v1388 = vunpack.c.h.b16 %v764
    %v1389 = vunpack.c.l.b16 %v765
    %v1390 = vunpack.c.h.b16 %v765
    %v1391 = vunpack.c.l.b16 %v766
    %v1392 = vunpack.c.h.b16 %v766
    %v1393 = vunpack.c.l.b16 %v767
    %v1394 = vunpack.c.h.b16 %v767
    %v1395 = vunpack.c.l.b16 %v768
    %v1396 = vunpack.c.h.b16 %v768
    %v1397 = vunpack.c.l.b16 %v769
    %v1398 = vunpack.c.h.b16 %v769
    %v1399 = vunpack.c.l.b16 %v770
    %v1400 = vunpack.c.h.b16 %v770
    %v1401 = vunpack.c.l.b16 %v771
    %v1402 = vunpack.c.h.b16 %v771
    %v1403 = vunpack.c.l.b16 %v772
    %v1404 = vunpack.c.h.b16 %v772
    %v1405 = vunpack.c.l.b16 %v773
    %v1406 = vunpack.c.h.b16 %v773
    %v1407 = vunpack.c.l.b16 %v774
    %v1408 = vunpack.c.h.b16 %v774
    %v1409 = vunpack.c.l.b16 %v775
    %v1410 = vunpack.c.h.b16 %v775
    %v1411 = vunpack.c.l.b16 %v776
    %v1412 = vunpack.c.h.b16 %v776
    %v1413 = vunpack.c.l.b16 %v777
    %v1414 = vunpack.c.h.b16 %v777
    %v1415 = vunpack.c.l.b16 %v778
    %v1416 = vunpack.c.h.b16 %v778
    %v1417 = vunpack.c.l.b16 %v779
    %v1418 = vunpack.c.h.b16 %v779
    %v1419 = vunpack.c.l.b16 %v780
    %v1420 = vunpack.c.h.b16 %v780
    %v1421 = vunpack.c.l.b16 %v781
    %v1422 = vunpack.c.h.b16 %v781
    %v1423 = vunpack.c.l.b16 %v782
    %v1424 = vunpack.c.h.b16 %v782
    %v1425 = vunpack.c.l.b16 %v783
    %v1426 = vunpack.c.h.b16 %v783
    %v1427 = vunpack.c.l.b16 %v784
    %v1428 = vunpack.c.h.b16 %v784
    %v1429 = vunpack.c.l.b16 %v785
    %v1430 = vunpack.c.h.b16 %v785
    %v1431 = vunpack.c.l.b16 %v786
    %v1432 = vunpack.c.h.b16 %v786
    %v1433 = vunpack.c.l.b16 %v787
    %v1434 = vunpack.c.h.b16 %v787
    %v1435 = vunpack.c.l.b16 %v788
    %v1436 = vunpack.c.h.b16 %v788
    %v1437 = vunpack.c.l.b16 %v789
    %v1438 = vunpack.c.h.b16 %v789
    %v1439 = vunpack.c.l.b16 %v790
    %v1440 = vunpack.c.h.b16 %v790
    %v1441 = vunpack.c.l.b16 %v791
    %v1442 = vunpack.c.h.b16 %v791
    %v1443 = vunpack.c.l.b16 %v792
    %v1444 = vunpack.c.h.b16 %v792
    %v1445 = vunpack.c.l.b16 %v793
    %v1446 = vunpack.c.h.b16 %v793
    %v1447 = vunpack.c.l.b16 %v794
    %v1448 = vunpack.c.h.b16 %v794
    %v1449 = vunpack.c.l.b16 %v795
    %v1450 = vunpack.c.h.b16 %v795
    %v1451 = vunpack.c.l.b16 %v796
    %v1452 = vunpack.c.h.b16 %v796
    %v1453 = vunpack.c.l.b16 %v797
    %v1454 = vunpack.c.h.b16 %v797
    %v1455 = vunpack.c.l.b16 %v798
    %v1456 = vunpack.c.h.b16 %v798
    %v1457 = vunpack.c.l.b16 %v799
    %v1458 = vunpack.c.h.b16 %v799
    %v1459 = vunpack.c.l.b16 %v800
    %v1460 = vunpack.c.h.b16 %v800
    %v1461 = vunpack.c.l.b16 %v801
    %v1462 = vunpack.c.h.b16 %v801
    %v1463 = vunpack.c.l.b16 %v802
    %v1464 = vunpack.c.h.b16 %v802
    %v1465 = vunpack.c.l.b16 %v803
    %v1466 = vunpack.c.h.b16 %v803
    %v1467 = vunpack.c.l.b16 %v804
    %v1468 = vunpack.c.h.b16 %v804
    %v1469 = vunpack.c.l.b16 %v805
    %v1470 = vunpack.c.h.b16 %v805
    %v1471 = vunpack.c.l.b16 %v806
    %v1472 = vunpack.c.h.b16 %v806
    %v1473 = vunpack.c.l.b16 %v807
    %v1474 = vunpack.c.h.b16 %v807
    %v1475 = vunpack.c.l.b16 %v808
    %v1476 = vunpack.c.h.b16 %v808
    %v1477 = vunpack.c.l.b16 %v809
    %v1478 = vunpack.c.h.b16 %v809
    %v1479 = vunpack.c.l.b16 %v810
    %v1480 = vunpack.c.h.b16 %v810
    %v1481 = vunpack.c.l.b16 %v811
    %v1482 = vunpack.c.h.b16 %v811
    %v1483 = vunpack.c.l.b16 %v812
    %v1484 = vunpack.c.h.b16 %v812
    %v1485 = vunpack.c.l.b16 %v813
    %v1486 = vunpack.c.h.b16 %v813
    %v1487 = vunpack.c.l.b16 %v814
    %v1488 = vunpack.c.h.b16 %v814
    %v1489 = vunpack.c.l.b16 %v815
    %v1490 = vunpack.c.h.b16 %v815
    %v1491 = vunpack.c.l.b16 %v816
    %v1492 = vunpack.c.h.b16 %v816
    %v1493 = vunpack.c.l.b16 %v817
    %v1494 = vunpack.c.h.b16 %v817
    %v1495 = vunpack.c.l.b16 %v818
    %v1496 = vunpack.c.h.b16 %v818
    %v1497 = vunpack.c.l.b16 %v819
    %v1498 = vunpack.c.h.b16 %v819
    %v1499 = vunpack.c.l.b16 %v820
    %v1500 = vunpack.c.h.b16 %v820
    %v1501 = vunpack.c.l.b16 %v821
    %v1502 = vunpack.c.h.b16 %v821
    %v1503 = vunpack.c.l.b16 %v822
    %v1504 = vunpack.c.h.b16 %v822
    %v1505 = vunpack.c.l.b16 %v823
    %v1506 = vunpack.c.h.b16 %v823
    %v1507 = vunpack.c.l.b16 %v824
    %v1508 = vunpack.c.h.b16 %v824
    %v1509 = vunpack.c.l.b16 %v825
    %v1510 = vunpack.c.h.b16 %v825
    %v1511 = vunpack.c.l.b16 %v826
    %v1512 = vunpack.c.h.b16 %v826
    %v1513 = vunpack.c.l.b16 %v827
    %v1514 = vunpack.c.h.b16 %v827
    %v1515 = vunpack.c.l.b16 %v828
    %v1516 = vunpack.c.h.b16 %v828
    %v1517 = vunpack.c.l.b16 %v829
    %v1518 = vunpack.c.h.b16 %v829
    %v1519 = vunpack.c.l.b16 %v830
    %v1520 = vunpack.c.h.b16 %v830
    %v1521 = vunpack.c.l.b16 %v831
    %v1522 = vunpack.c.h.b16 %v831
    %v1523 = vunpack.c.l.b16 %v832
    %v1524 = vunpack.c.h.b16 %v832
    %v1525 = vunpack.c.l.b16 %v833
    %v1526 = vunpack.c.h.b16 %v833
    %v1527 = vunpack.c.l.b16 %v834
    %v1528 = vunpack.c.h.b16 %v834
    %v1529 = vunpack.c.l.b16 %v835
    %v1530 = vunpack.c.h.b16 %v835
    %v1531 = vunpack.c.l.b16 %v836
    %v1532 = vunpack.c.h.b16 %v836
    %v1533 = vunpack.c.l.b16 %v837
    %v1534 = vunpack.c.h.b16 %v837
    %v1535 = vunpack.c.l.b16 %v838
    %v1536 = vunpack.c.h.b16 %v838
    %v1537 = vunpack.c.l.b16 %v839
    %v1538 = vunpack.c.h.b16 %v839
    %v1539 = vunpack.c.l.b16 %v840
    %v1540 = vunpack.c.h.b16 %v840
    %v1541 = vunpack.c.l.b16 %v841
    %v1542 = vunpack.c.h.b16 %v841
    %v1543 = vunpack.c.l.b16 %v842
    %v1544 = vunpack.c.h.b16 %v842
    %v1545 = vunpack.c.l.b16 %v843
    %v1546 = vunpack.c.h.b16 %v843
    %v1547 = vunpack.c.l.b16 %v844
    %v1548 = vunpack.c.h.b16 %v844
    %v1549 = vunpack.c.l.b16 %v845
    %v1550 = vunpack.c.h.b16 %v845
    %v1551 = vunpack.c.l.b16 %v846
    %v1552 = vunpack.c.h.b16 %v846
    %v1553 = vunpack.c.l.b16 %v847
    %v1554 = vunpack.c.h.b16 %v847
    %v1555 = vunpack.c.l.b16 %v848
    %v1556 = vunpack.c.h.b16 %v848
    %v1557 = vunpack.c.l.b16 %v849
    %v1558 = vunpack.c.h.b16 %v849
    %v1559 = vunpack.c.l.b16 %v850
    %v1560 = vunpack.c.h.b16 %v850
    %v1561 = vunpack.c.l.b16 %v851
    %v1562 = vunpack.c.h.b16 %v851
    %v1563 = vunpack.c.l.b16 %v852
    %v1564 = vunpack.c.h.b16 %v852
    %v1565 = vunpack.c.l.b16 %v853
    %v1566 = vunpack.c.h.b16 %v853
    %v1567 = vunpack.c.l.b16 %v854
    %v1568 = vunpack.c.h.b16 %v854
    %v1569 = vunpack.c.l.b16 %v855
    %v1570 = vunpack.c.h.b16 %v855
    %v1571 = vunpack.c.l.b16 %v856
    %v1572 = vunpack.c.h.b16 %v856
    %v1573 = vunpack.c.l.b16 %v857
    %v1574 = vunpack.c.h.b16 %v857
    %v1575 = vunpack.c.l.b16 %v858
    %v1576 = vunpack.c.h.b16 %v858
    %v1577 = vunpack.c.l.b16 %v859
    %v1578 = vunpack.c.h.b16 %v859
    %v1579 = vunpack.c.l.b16 %v860
    %v1580 = vunpack.c.h.b16 %v860
    %v1581 = vunpack.c.l.b16 %v861
    %v1582 = vunpack.c.h.b16 %v861
    %v1583 = vunpack.c.l.b16 %v862
    %v1584 = vunpack.c.h.b16 %v862
    %v1585 = vunpack.c.l.b16 %v863
    %v1586 = vunpack.c.h.b16 %v863
    %v1587 = vunpack.c.l.b16 %v864
    %v1588 = vunpack.c.h.b16 %v864
    %v1589 = vunpack.c.l.b16 %v865
    %v1590 = vunpack.c.h.b16 %v865
    %v1591 = vunpack.c.l.b16 %v866
    %v1592 = vunpack.c.h.b16 %v866
    %v1593 = vunpack.c.l.b16 %v867
    %v1594 = vunpack.c.h.b16 %v867
    %v1595 = vunpack.c.l.b16 %v868
    %v1596 = vunpack.c.h.b16 %v868
    %v1597 = vunpack.c.l.b16 %v869
    %v1598 = vunpack.c.h.b16 %v869
    %v1599 = vunpack.c.l.b16 %v870
    %v1600 = vunpack.c.h.b16 %v870
    %v1601 = vunpack.c.l.b16 %v871
    %v1602 = vunpack.c.h.b16 %v871
    %v1603 = vunpack.c.l.b16 %v872
    %v1604 = vunpack.c.h.b16 %v872
    %v1605 = vunpack.c.l.b16 %v873
    %v1606 = vunpack.c.h.b16 %v873
    %v1607 = vunpack.c.l.b16 %v874
    %v1608 = vunpack.c.h.b16 %v874
    %v1609 = vunpack.c.l.b16 %v875
    %v1610 = vunpack.c.h.b16 %v875
    %v1611 = vunpack.c.l.b16 %v876
    %v1612 = vunpack.c.h.b16 %v876
    %v1613 = vunpack.c.l.b16 %v877
    %v1614 = vunpack.c.h.b16 %v877
    %v1615 = vunpack.c.l.b16 %v878
    %v1616 = vunpack.c.h.b16 %v878
    %v1617 = vunpack.c.l.b16 %v879
    %v1618 = vunpack.c.h.b16 %v879
    %v1619 = vunpack.c.l.b16 %v880
    %v1620 = vunpack.c.h.b16 %v880
    %v1621 = vunpack.c.l.b16 %v881
    %v1622 = vunpack.c.h.b16 %v881
    %v1623 = vunpack.c.l.b16 %v882
    %v1624 = vunpack.c.h.b16 %v882
    %v1625 = vunpack.c.l.b16 %v883
    %v1626 = vunpack.c.h.b16 %v883
    %v1627 = vunpack.c.l.b16 %v884
    %v1628 = vunpack.c.h.b16 %v884
    %v1629 = vunpack.c.l.b16 %v885
    %v1630 = vunpack.c.h.b16 %v885
    %v1631 = vunpack.c.l.b16 %v886
    %v1632 = vunpack.c.h.b16 %v886
    %v1633 = vunpack.c.l.b16 %v887
    %v1634 = vunpack.c.h.b16 %v887
    %v1635 = vunpack.c.l.b16 %v888
    %v1636 = vunpack.c.h.b16 %v888
    %v1637 = vunpack.c.l.b16 %v889
    %v1638 = vunpack.c.h.b16 %v889
    %v1639 = vunpack.c.l.b16 %v890
    %v1640 = vunpack.c.h.b16 %v890
    %v1641 = vunpack.c.l.b16 %v891
    %v1642 = vunpack.c.h.b16 %v891
    %v1643 = vunpack.c.l.b16 %v892
    %v1644 = vunpack.c.h.b16 %v892
    %v1645 = vunpack.c.l.b16 %v893
    %v1646 = vunpack.c.h.b16 %v893
    %v1647 = vunpack.c.l.b16 %v894
    %v1648 = vunpack.c.h.b16 %v894
    %v1649 = vunpack.c.l.b16 %v895
    %v1650 = vunpack.c.h.b16 %v895
    %v1651 = vunpack.c.l.b16 %v896
    %v1652 = vunpack.c.h.b16 %v896
    %v1653 = vunpack.c.l.b16 %v897
    %v1654 = vunpack.c.h.b16 %v897
    %v1655 = vunpack.c.l.b16 %v898
    %v1656 = vunpack.c.h.b16 %v898
    %v1657 = vunpack.c.l.b16 %v899
    %v1658 = vunpack.c.h.b16 %v899
    %v1659 = vunpack.c.l.b16 %v900
    %v1660 = vunpack.c.h.b16 %v900
    %v1661 = vunpack.c.l.b16 %v901
    %v1662 = vunpack.c.h.b16 %v901
    %v1663 = vunpack.c.l.b16 %v902
    %v1664 = vunpack.c.h.b16 %v902
    %v1665 = vunpack.c.l.b16 %v903
    %v1666 = vunpack.c.h.b16 %v903
    %v1667 = vunpack.c.l.b16 %v904
    %v1668 = vunpack.c.h.b16 %v904
    %v1669 = vunpack.c.l.b16 %v905
    %v1670 = vunpack.c.h.b16 %v905
    %v1671 = vunpack.c.l.b16 %v906
    %v1672 = vunpack.c.h.b16 %v906
    %v1673 = vunpack.c.l.b16 %v907
    %v1674 = vunpack.c.h.b16 %v907
    %v1675 = vunpack.c.l.b16 %v908
    %v1676 = vunpack.c.h.b16 %v908
    %v1677 = vunpack.c.l.b16 %v909
    %v1678 = vunpack.c.h.b16 %v909
    %v1679 = vunpack.c.l.b16 %v910
    %v1680 = vunpack.c.h.b16 %v910
    %v1681 = vunpack.c.l.b16 %v911
    %v1682 = vunpack.c.h.b16 %v911
    %v1683 = vunpack.c.l.b16 %v912
    %v1684 = vunpack.c.h.b16 %v912
    %v1685 = vunpack.c.l.b16 %v913
    %v1686 = vunpack.c.h.b16 %v913
    %v1687 = vunpack.c.l.b16 %v914
    %v1688 = vunpack.c.h.b16 %v914
    %v1689 = vunpack.c.l.b16 %v915
    %v1690 = vunpack.c.h.b16 %v915
    %v1691 = vunpack.c.l.b16 %v916
    %v1692 = vunpack.c.h.b16 %v916
    %v1693 = vunpack.c.l.b16 %v917
    %v1694 = vunpack.c.h.b16 %v917
    %v1695 = vunpack.c.l.b16 %v918
    %v1696 = vunpack.c.h.b16 %v918
    %v1697 = vunpack.c.l.b16 %v919
    %v1698 = vunpack.c.h.b16 %v919
    %v1699 = vunpack.c.l.b16 %v920
    %v1700 = vunpack.c.h.b16 %v920
    %v1701 = vunpack.c.l.b16 %v921
    %v1702 = vunpack.c.h.b16 %v921
    %v1703 = vunpack.c.l.b16 %v922
    %v1704 = vunpack.c.h.b16 %v922
    %v1705 = vunpack.c.l.b16 %v923
    %v1706 = vunpack.c.h.b16 %v923
    %v1707 = vunpack.c.l.b16 %v924
    %v1708 = vunpack.c.h.b16 %v924
    %v1709 = vunpack.c.l.b16 %v925
    %v1710 = vunpack.c.h.b16 %v925
    %v1711 = vunpack.c.l.b16 %v926
    %v1712 = vunpack.c.h.b16 %v926
    %v1713 = vunpack.c.l.b16 %v927
    %v1714 = vunpack.c.h.b16 %v927
    %v1715 = vunpack.c.l.b16 %v928
    %v1716 = vunpack.c.h.b16 %v928
    %v1717 = vunpack.c.l.b16 %v929
    %v1718 = vunpack.c.h.b16 %v929
    %v1719 = vunpack.c.l.b16 %v930
    %v1720 = vunpack.c.h.b16 %v930
    %v1721 = vpack.c.b16 %v1213, %v1209
    %v1722 = vpack.c.b16 %v1214, %v1210
    %v1723 = vpack.c.b16 %v1215, %v1211
    %v1724 = vpack.c.b16 %v1216, %v1212
    %v1725 = vpack.c.b16 %v1221, %v1217
    %v1726 = vpack.c.b16 %v1222, %v1218
    %v1727 = vpack.c.b16 %v1223, %v1219
    %v1728 = vpack.c.b16 %v1224, %v1220
    %v1729 = vpack.c.b16 %v1229, %v1225
    %v1730 = vpack.c.b16 %v1230, %v1226
    %v1731 = vpack.c.b16 %v1231, %v1227
    %v1732 = vpack.c.b16 %v1232, %v1228
    %v1733 = vpack.c.b16 %v1237, %v1233
    %v1734 = vpack.c.b16 %v1238, %v1234
    %v1735 = vpack.c.b16 %v1239, %v1235
    %v1736 = vpack.c.b16 %v1240, %v1236
    %v1737 = vpack.c.b16 %v1245, %v1241
    %v1738 = vpack.c.b16 %v1246, %v1242
    %v1739 = vpack.c.b16 %v1247, %v1243
    %v1740 = vpack.c.b16 %v1248, %v1244
    %v1741 = vpack.c.b16 %v1253, %v1249
    %v1742 = vpack.c.b16 %v1254, %v1250
    %v1743 = vpack.c.b16 %v1255, %v1251
    %v1744 = vpack.c.b16 %v1256, %v1252
    %v1745 = vpack.c.b16 %v1261, %v1257
    %v1746 = vpack.c.b16 %v1262, %v1258
    %v1747 = vpack.c.b16 %v1263, %v1259
    %v1748 = vpack.c.b16 %v1264, %v1260
    %v1749 = vpack.c.b16 %v1269, %v1265
    %v1750 = vpack.c.b16 %v1270, %v1266
    %v1751 = vpack.c.b16 %v1271, %v1267
    %v1752 = vpack.c.b16 %v1272, %v1268
    %v1753 = vpack.c.b16 %v1277, %v1273
    %v1754 = vpack.c.b16 %v1278, %v1274
    %v1755 = vpack.c.b16 %v1279, %v1275
    %v1756 = vpack.c.b16 %v1280, %v1276
    %v1757 = vpack.c.b16 %v1285, %v1281
    %v1758 = vpack.c.b16 %v1286, %v1282
    %v1759 = vpack.c.b16 %v1287, %v1283
    %v1760 = vpack.c.b16 %v1288, %v1284
    %v1761 = vpack.c.b16 %v1293, %v1289
    %v1762 = vpack.c.b16 %v1294, %v1290
    %v1763 = vpack.c.b16 %v1295, %v1291
    %v1764 = vpack.c.b16 %v1296, %v1292
    %v1765 = vpack.c.b16 %v1301, %v1297
    %v1766 = vpack.c.b16 %v1302, %v1298
    %v1767 = vpack.c.b16 %v1303, %v1299
    %v1768 = vpack.c.b16 %v1304, %v1300
    %v1769 = vpack.c.b16 %v1309, %v1305
    %v1770 = vpack.c.b16 %v1310, %v1306
    %v1771 = vpack.c.b16 %v1311, %v1307
    %v1772 = vpack.c.b16 %v1312, %v1308
    %v1773 = vpack.c.b16 %v1317, %v1313
    %v1774 = vpack.c.b16 %v1318, %v1314
    %v1775 = vpack.c.b16 %v1319, %v1315
    %v1776 = vpack.c.b16 %v1320, %v1316
    %v1777 = vpack.c.b16 %v1325, %v1321
    %v1778 = vpack.c.b16 %v1326, %v1322
    %v1779 = vpack.c.b16 %v1327, %v1323
    %v1780 = vpack.c.b16 %v1328, %v1324
    %v1781 = vpack.c.b16 %v1333, %v1329
    %v1782 = vpack.c.b16 %v1334, %v1330
    %v1783 = vpack.c.b16 %v1335, %v1331
    %v1784 = vpack.c.b16 %v1336, %v1332
    %v1785 = vpack.c.b16 %v1341, %v1337
    %v1786 = vpack.c.b16 %v1342, %v1338
    %v1787 = vpack.c.b16 %v1343, %v1339
    %v1788 = vpack.c.b16 %v1344, %v1340
    %v1789 = vpack.c.b16 %v1349, %v1345
    %v1790 = vpack.c.b16 %v1350, %v1346
    %v1791 = vpack.c.b16 %v1351, %v1347
    %v1792 = vpack.c.b16 %v1352, %v1348
    %v1793 = vpack.c.b16 %v1357, %v1353
    %v1794 = vpack.c.b16 %v1358, %v1354
    %v1795 = vpack.c.b16 %v1359, %v1355
    %v1796 = vpack.c.b16 %v1360, %v1356
    %v1797 = vpack.c.b16 %v1365, %v1361
    %v1798 = vpack.c.b16 %v1366, %v1362
    %v1799 = vpack.c.b16 %v1367, %v1363
    %v1800 = vpack.c.b16 %v1368, %v1364
    %v1801 = vpack.c.b16 %v1373, %v1369
    %v1802 = vpack.c.b16 %v1374, %v1370
    %v1803 = vpack.c.b16 %v1375, %v1371
    %v1804 = vpack.c.b16 %v1376, %v1372
    %v1805 = vpack.c.b16 %v1381, %v1377
    %v1806 = vpack.c.b16 %v1382, %v1378
    %v1807 = vpack.c.b16 %v1383, %v1379
    %v1808 = vpack.c.b16 %v1384, %v1380
    %v1809 = vpack.c.b16 %v1389, %v1385
    %v1810 = vpack.c.b16 %v1390, %v1386
    %v1811 = vpack.c.b16 %v1391, %v1387
    %v1812 = vpack.c.b16 %v1392, %v1388
    %v1813 = vpack.c.b16 %v1397, %v1393
    %v1814 = vpack.c.b16 %v1398, %v1394
    %v1815 = vpack.c.b16 %v1399, %v1395
    %v1816 = vpack.c.b16 %v1400, %v1396
    %v1817 = vpack.c.b16 %v1405, %v1401
    %v1818 = vpack.c.b16 %v1406, %v1402
    %v1819 = vpack.c.b16 %v1407, %v1403
    %v1820 = vpack.c.b16 %v1408, %v1404
    %v1821 = vpack.c.b16 %v1413, %v1409
    %v1822 = vpack.c.b16 %v1414, %v1410
    %v1823 = vpack.c.b16 %v1415, %v1411
    %v1824 = vpack.c.b16 %v1416, %v1412
    %v1825 = vpack.c.b16 %v1421, %v1417
    %v1826 = vpack.c.b16 %v1422, %v1418
    %v1827 = vpack.c.b16 %v1423, %v1419
    %v1828 = vpack.c.b16 %v1424, %v1420
    %v1829 = vpack.c.b16 %v1429, %v1425
    %v1830 = vpack.c.b16 %v1430, %v1426
    %v1831 = vpack.c.b16 %v1431, %v1427
    %v1832 = vpack.c.b16 %v1432, %v1428
    %v1833 = vpack.c.b16 %v1437, %v1433
    %v1834 = vpack.c.b16 %v1438, %v1434
    %v1835 = vpack.c.b16 %v1439, %v1435
    %v1836 = vpack.c.b16 %v1440, %v1436
    %v1837 = vpack.c.b16 %v1445, %v1441
    %v1838 = vpack.c.b16 %v1446, %v1442
    %v1839 = vpack.c.b16 %v1447, %v1443
    %v1840 = vpack.c.b16 %v1448, %v1444
    %v1841 = vpack.c.b16 %v1453, %v1449
    %v1842 = vpack.c.b16 %v1454, %v1450
    %v1843 = vpack.c.b16 %v1455, %v1451
    %v1844 = vpack.c.b16 %v1456, %v1452
    %v1845 = vpack.c.b16 %v1461, %v1457
    %v1846 = vpack.c.b16 %v1462, %v1458
    %v1847 = vpack.c.b16 %v1463, %v1459
    %v1848 = vpack.c.b16 %v1464, %v1460
    %v1849 = vpack.c.b16 %v1469, %v1465
    %v1850 = vpack.c.b16 %v1470, %v1466
    %v1851 = vpack.c.b16 %v1471, %v1467
    %v1852 = vpack.c.b16 %v1472, %v1468
    %v1853 = vpack.c.b16 %v1477, %v1473
    %v1854 = vpack.c.b16 %v1478, %v1474
    %v1855 = vpack.c.b16 %v1479, %v1475
    %v1856 = vpack.c.b16 %v1480, %v1476
    %v1857 = vpack.c.b16 %v1485, %v1481
    %v1858 = vpack.c.b16 %v1486, %v1482
    %v1859 = vpack.c.b16 %v1487, %v1483
    %v1860 = vpack.c.b16 %v1488, %v1484
    %v1861 = vpack.c.b16 %v1493, %v1489
    %v1862 = vpack.c.b16 %v1494, %v1490
    %v1863 = vpack.c.b16 %v1495, %v1491
    %v1864 = vpack.c.b16 %v1496, %v1492
    %v1865 = vpack.c.b16 %v1501, %v1497
    %v1866 = vpack.c.b16 %v1502, %v1498
    %v1867 = vpack.c.b16 %v1503, %v1499
    %v1868 = vpack.c.b16 %v1504, %v1500
    %v1869 = vpack.c.b16 %v1509, %v1505
    %v1870 = vpack.c.b16 %v1510, %v1506
    %v1871 = vpack.c.b16 %v1511, %v1507
    %v1872 = vpack.c.b16 %v1512, %v1508
    %v1873 = vpack.c.b16 %v1517, %v1513
    %v1874 = vpack.c.b16 %v1518, %v1514
    %v1875 = vpack.c.b16 %v1519, %v1515
    %v1876 = vpack.c.b16 %v1520, %v1516
    %v1877 = vpack.c.b16 %v1525, %v1521
    %v1878 = vpack.c.b16 %v1526, %v1522
    %v1879 = vpack.c.b16 %v1527, %v1523
    %v1880 = vpack.c.b16 %v1528, %v1524
    %v1881 = vpack.c.b16 %v1533, %v1529
    %v1882 = vpack.c.b16 %v1534, %v1530
    %v1883 = vpack.c.b16 %v1535, %v1531
    %v1884 = vpack.c.b16 %v1536, %v1532
    %v1885 = vpack.c.b16 %v1541, %v1537
    %v1886 = vpack.c.b16 %v1542, %v1538
    %v1887 = vpack.c.b16 %v1543, %v1539
    %v1888 = vpack.c.b16 %v1544, %v1540
    %v1889 = vpack.c.b16 %v1549, %v1545
    %v1890 = vpack.c.b16 %v1550, %v1546
    %v1891 = vpack.c.b16 %v1551, %v1547
    %v1892 = vpack.c.b16 %v1552, %v1548
    %v1893 = vpack.c.b16 %v1557, %v1553
    %v1894 = vpack.c.b16 %v1558, %v1554
    %v1895 = vpack.c.b16 %v1559, %v1555
    %v1896 = vpack.c.b16 %v1560, %v1556
    %v1897 = vpack.c.b16 %v1565, %v1561
    %v1898 = vpack.c.b16 %v1566, %v1562
    %v1899 = vpack.c.b16 %v1567, %v1563
    %v1900 = vpack.c.b16 %v1568, %v1564
    %v1901 = vpack.c.b16 %v1573, %v1569
    %v1902 = vpack.c.b16 %v1574, %v1570
    %v1903 = vpack.c.b16 %v1575, %v1571
    %v1904 = vpack.c.b16 %v1576, %v1572
    %v1905 = vpack.c.b16 %v1581, %v1577
    %v1906 = vpack.c.b16 %v1582, %v1578
    %v1907 = vpack.c.b16 %v1583, %v1579
    %v1908 = vpack.c.b16 %v1584, %v1580
    %v1909 = vpack.c.b16 %v1589, %v1585
    %v1910 = vpack.c.b16 %v1590, %v1586
    %v1911 = vpack.c.b16 %v1591, %v1587
    %v1912 = vpack.c.b16 %v1592, %v1588
    %v1913 = vpack.c.b16 %v1597, %v1593
    %v1914 = vpack.c.b16 %v1598, %v1594
    %v1915 = vpack.c.b16 %v1599, %v1595
    %v1916 = vpack.c.b16 %v1600, %v1596
    %v1917 = vpack.c.b16 %v1605, %v1601
    %v1918 = vpack.c.b16 %v1606, %v1602
    %v1919 = vpack.c.b16 %v1607, %v1603
    %v1920 = vpack.c.b16 %v1608, %v1604
    %v1921 = vpack.c.b16 %v1613, %v1609
    %v1922 = vpack.c.b16 %v1614, %v1610
    %v1923 = vpack.c.b16 %v1615, %v1611
    %v1924 = vpack.c.b16 %v1616, %v1612
    %v1925 = vpack.c.b16 %v1621, %v1617
    %v1926 = vpack.c.b16 %v1622, %v1618
    %v1927 = vpack.c.b16 %v1623, %v1619
    %v1928 = vpack.c.b16 %v1624, %v1620
    %v1929 = vpack.c.b16 %v1629, %v1625
    %v1930 = vpack.c.b16 %v1630, %v1626
    %v1931 = vpack.c.b16 %v1631, %v1627
    %v1932 = vpack.c.b16 %v1632, %v1628
    %v1933 = vpack.c.b16 %v1637, %v1633
    %v1934 = vpack.c.b16 %v1638, %v1634
    %v1935 = vpack.c.b16 %v1639, %v1635
    %v1936 = vpack.c.b16 %v1640, %v1636
    %v1937 = vpack.c.b16 %v1645, %v1641
    %v1938 = vpack.c.b16 %v1646, %v1642
    %v1939 = vpack.c.b16 %v1647, %v1643
    %v1940 = vpack.c.b16 %v1648, %v1644
    %v1941 = vpack.c.b16 %v1653, %v1649
    %v1942 = vpack.c.b16 %v1654, %v1650
    %v1943 = vpack.c.b16 %v1655, %v1651
    %v1944 = vpack.c.b16 %v1656, %v1652
    %v1945 = vpack.c.b16 %v1661, %v1657
    %v1946 = vpack.c.b16 %v1662, %v1658
    %v1947 = vpack.c.b16 %v1663, %v1659
    %v1948 = vpack.c.b16 %v1664, %v1660
    %v1949 = vpack.c.b16 %v1669, %v1665
    %v1950 = vpack.c.b16 %v1670, %v1666
    %v1951 = vpack.c.b16 %v1671, %v1667
    %v1952 = vpack.c.b16 %v1672, %v1668
    %v1953 = vpack.c.b16 %v1677, %v1673
    %v1954 = vpack.c.b16 %v1678, %v1674
    %v1955 = vpack.c.b16 %v1679, %v1675
    %v1956 = vpack.c.b16 %v1680, %v1676
    %v1957 = vpack.c.b16 %v1685, %v1681
    %v1958 = vpack.c.b16 %v1686, %v1682
    %v1959 = vpack.c.b16 %v1687, %v1683
    %v1960 = vpack.c.b16 %v1688, %v1684
    %v1961 = vpack.c.b16 %v1693, %v1689
    %v1962 = vpack.c.b16 %v1694, %v1690
    %v1963 = vpack.c.b16 %v1695, %v1691
    %v1964 = vpack.c.b16 %v1696, %v1692
    %v1965 = vpack.c.b16 %v1701, %v1697
    %v1966 = vpack.c.b16 %v1702, %v1698
    %v1967 = vpack.c.b16 %v1703, %v1699
    %v1968 = vpack.c.b16 %v1704, %v1700
    %v1969 = vpack.c.b16 %v1709, %v1705
    %v1970 = vpack.c.b16 %v1710, %v1706
    %v1971 = vpack.c.b16 %v1711, %v1707
    %v1972 = vpack.c.b16 %v1712, %v1708
    %v1973 = vpack.c.b16 %v1717, %v1713
    %v1974 = vpack.c.b16 %v1718, %v1714
    %v1975 = vpack.c.b16 %v1719, %v1715
    %v1976 = vpack.c.b16 %v1720, %v1716
    %2233 = vmatprep.subr.bf16.mxu0 %v1750
    %2234 = vmatpush1.bf16.msra.mxu0 %v1749
    %2235 = vmatprep.subr.bf16.mxu0 %v1746
    %2236 = vmatpush1.bf16.msra.mxu0 %v1745
    %2237 = vmatprep.subr.bf16.mxu0 %v1742
    %2238 = vmatpush1.bf16.msra.mxu0 %v1741
    %2239 = vmatprep.subr.bf16.mxu0 %v1738
    %2240 = vmatpush1.bf16.msra.mxu0 %v1737
    %2241 = vmatprep.subr.bf16.mxu0 %v1734
    %2242 = vmatpush1.bf16.msra.mxu0 %v1733
    %2243 = vmatprep.subr.bf16.mxu0 %v1730
    %2244 = vmatpush1.bf16.msra.mxu0 %v1729
    %2245 = vmatprep.subr.bf16.mxu0 %v1726
    %2246 = vmatpush1.bf16.msra.mxu0 %v1725
    %2247 = vmatprep.subr.bf16.mxu0 %v1722
    %2248 = vmatpush1.bf16.msra.mxu0 %v1721
    %2249 = vmatprep.subr.bf16.mxu0 %v1782
    %2250 = vmatpush2.bf16.msra.mxu0 %v1781
    %2251 = vmatprep.subr.bf16.mxu0 %v1778
    %2252 = vmatpush2.bf16.msra.mxu0 %v1777
    %2253 = vmatprep.subr.bf16.mxu0 %v1774
    %2254 = vmatpush2.bf16.msra.mxu0 %v1773
    %2255 = vmatprep.subr.bf16.mxu0 %v1770
    %2256 = vmatpush2.bf16.msra.mxu0 %v1769
    %2257 = vmatprep.subr.bf16.mxu0 %v1766
    %2258 = vmatpush2.bf16.msra.mxu0 %v1765
    %2259 = vmatprep.subr.bf16.mxu0 %v1762
    %2260 = vmatpush2.bf16.msra.mxu0 %v1761
    %2261 = vmatprep.subr.bf16.mxu0 %v1758
    %2262 = vmatpush2.bf16.msra.mxu0 %v1757
    %2263 = vmatprep.subr.bf16.mxu0 %v1754
    %2264 = vmatpush2.bf16.msra.mxu0 %v1753
    %2265 = vmatprep.mubr.bf16.mxu0 %v668
    %2266 = vmatmul.mubr.bf16.gmra.mxu0 %v667
    %v2267 = vpop.f32.mrf.mxu0
    %v2268 = vadd.f32 %v936, %v2267
    %v2269 = vpop.f32.mrf.mxu0
    %v2270 = vadd.f32 %v940, %v2269
    %v2271 = vpop.f32.mrf.mxu0
    %v2272 = vpop.f32.mrf.mxu0
    %2273 = vdwg.mxu0
    %2274 = vmatprep.subr.bf16.mxu0 %v1814
    %2275 = vmatpush1.bf16.msra.mxu0 %v1813
    %2276 = vmatprep.subr.bf16.mxu0 %v1810
    %2277 = vmatpush1.bf16.msra.mxu0 %v1809
    %2278 = vmatprep.subr.bf16.mxu0 %v1806
    %2279 = vmatpush1.bf16.msra.mxu0 %v1805
    %2280 = vmatprep.subr.bf16.mxu0 %v1802
    %2281 = vmatpush1.bf16.msra.mxu0 %v1801
    %2282 = vmatprep.subr.bf16.mxu0 %v1798
    %2283 = vmatpush1.bf16.msra.mxu0 %v1797
    %2284 = vmatprep.subr.bf16.mxu0 %v1794
    %2285 = vmatpush1.bf16.msra.mxu0 %v1793
    %2286 = vmatprep.subr.bf16.mxu0 %v1790
    %2287 = vmatpush1.bf16.msra.mxu0 %v1789
    %2288 = vmatprep.subr.bf16.mxu0 %v1786
    %2289 = vmatpush1.bf16.msra.mxu0 %v1785
    %2290 = vmatprep.subr.bf16.mxu0 %v1846
    %2291 = vmatpush2.bf16.msra.mxu0 %v1845
    %2292 = vmatprep.subr.bf16.mxu0 %v1842
    %2293 = vmatpush2.bf16.msra.mxu0 %v1841
    %2294 = vmatprep.subr.bf16.mxu0 %v1838
    %2295 = vmatpush2.bf16.msra.mxu0 %v1837
    %2296 = vmatprep.subr.bf16.mxu0 %v1834
    %2297 = vmatpush2.bf16.msra.mxu0 %v1833
    %2298 = vmatprep.subr.bf16.mxu0 %v1830
    %2299 = vmatpush2.bf16.msra.mxu0 %v1829
    %2300 = vmatprep.subr.bf16.mxu0 %v1826
    %2301 = vmatpush2.bf16.msra.mxu0 %v1825
    %2302 = vmatprep.subr.bf16.mxu0 %v1822
    %2303 = vmatpush2.bf16.msra.mxu0 %v1821
    %2304 = vmatprep.subr.bf16.mxu0 %v1818
    %2305 = vmatpush2.bf16.msra.mxu0 %v1817
    %2306 = vmatprep.mubr.bf16.mxu0 %v670
    %2307 = vmatmul.mubr.bf16.gmra.mxu0 %v669
    %v2308 = vpop.f32.mrf.mxu0
    %v2309 = vadd.f32 %v2268, %v2308
    %v2310 = vpop.f32.mrf.mxu0
    %v2311 = vadd.f32 %v2270, %v2310
    %v2312 = vpop.f32.mrf.mxu0
    %v2313 = vpop.f32.mrf.mxu0
    %2314 = vdwg.mxu0
    %2315 = vmatprep.subr.bf16.mxu0 %v1878
    %2316 = vmatpush1.bf16.msra.mxu0 %v1877
    %2317 = vmatprep.subr.bf16.mxu0 %v1874
    %2318 = vmatpush1.bf16.msra.mxu0 %v1873
    %2319 = vmatprep.subr.bf16.mxu0 %v1870
    %2320 = vmatpush1.bf16.msra.mxu0 %v1869
    %2321 = vmatprep.subr.bf16.mxu0 %v1866
    %2322 = vmatpush1.bf16.msra.mxu0 %v1865
    %2323 = vmatprep.subr.bf16.mxu0 %v1862
    %2324 = vmatpush1.bf16.msra.mxu0 %v1861
    %2325 = vmatprep.subr.bf16.mxu0 %v1858
    %2326 = vmatpush1.bf16.msra.mxu0 %v1857
    %2327 = vmatprep.subr.bf16.mxu0 %v1854
    %2328 = vmatpush1.bf16.msra.mxu0 %v1853
    %2329 = vmatprep.subr.bf16.mxu0 %v1850
    %2330 = vmatpush1.bf16.msra.mxu0 %v1849
    %2331 = vmatprep.subr.bf16.mxu0 %v1910
    %2332 = vmatpush2.bf16.msra.mxu0 %v1909
    %2333 = vmatprep.subr.bf16.mxu0 %v1906
    %2334 = vmatpush2.bf16.msra.mxu0 %v1905
    %2335 = vmatprep.subr.bf16.mxu0 %v1902
    %2336 = vmatpush2.bf16.msra.mxu0 %v1901
    %2337 = vmatprep.subr.bf16.mxu0 %v1898
    %2338 = vmatpush2.bf16.msra.mxu0 %v1897
    %2339 = vmatprep.subr.bf16.mxu0 %v1894
    %2340 = vmatpush2.bf16.msra.mxu0 %v1893
    %2341 = vmatprep.subr.bf16.mxu0 %v1890
    %2342 = vmatpush2.bf16.msra.mxu0 %v1889
    %2343 = vmatprep.subr.bf16.mxu0 %v1886
    %2344 = vmatpush2.bf16.msra.mxu0 %v1885
    %2345 = vmatprep.subr.bf16.mxu0 %v1882
    %2346 = vmatpush2.bf16.msra.mxu0 %v1881
    %2347 = vmatprep.mubr.bf16.mxu0 %v672
    %2348 = vmatmul.mubr.bf16.gmra.mxu0 %v671
    %v2349 = vpop.f32.mrf.mxu0
    %v2350 = vadd.f32 %v2309, %v2349
    %v2351 = vpop.f32.mrf.mxu0
    %v2352 = vadd.f32 %v2311, %v2351
    %v2353 = vpop.f32.mrf.mxu0
    %v2354 = vpop.f32.mrf.mxu0
    %2355 = vdwg.mxu0
    %2356 = vmatprep.subr.bf16.mxu0 %v1942
    %2357 = vmatpush1.bf16.msra.mxu0 %v1941
    %2358 = vmatprep.subr.bf16.mxu0 %v1938
    %2359 = vmatpush1.bf16.msra.mxu0 %v1937
    %2360 = vmatprep.subr.bf16.mxu0 %v1934
    %2361 = vmatpush1.bf16.msra.mxu0 %v1933
    %2362 = vmatprep.subr.bf16.mxu0 %v1930
    %2363 = vmatpush1.bf16.msra.mxu0 %v1929
    %2364 = vmatprep.subr.bf16.mxu0 %v1926
    %2365 = vmatpush1.bf16.msra.mxu0 %v1925
    %2366 = vmatprep.subr.bf16.mxu0 %v1922
    %2367 = vmatpush1.bf16.msra.mxu0 %v1921
    %2368 = vmatprep.subr.bf16.mxu0 %v1918
    %2369 = vmatpush1.bf16.msra.mxu0 %v1917
    %2370 = vmatprep.subr.bf16.mxu0 %v1914
    %2371 = vmatpush1.bf16.msra.mxu0 %v1913
    %2372 = vmatprep.subr.bf16.mxu0 %v1974
    %2373 = vmatpush2.bf16.msra.mxu0 %v1973
    %2374 = vmatprep.subr.bf16.mxu0 %v1970
    %2375 = vmatpush2.bf16.msra.mxu0 %v1969
    %2376 = vmatprep.subr.bf16.mxu0 %v1966
    %2377 = vmatpush2.bf16.msra.mxu0 %v1965
    %2378 = vmatprep.subr.bf16.mxu0 %v1962
    %2379 = vmatpush2.bf16.msra.mxu0 %v1961
    %2380 = vmatprep.subr.bf16.mxu0 %v1958
    %2381 = vmatpush2.bf16.msra.mxu0 %v1957
    %2382 = vmatprep.subr.bf16.mxu0 %v1954
    %2383 = vmatpush2.bf16.msra.mxu0 %v1953
    %2384 = vmatprep.subr.bf16.mxu0 %v1950
    %2385 = vmatpush2.bf16.msra.mxu0 %v1949
    %2386 = vmatprep.subr.bf16.mxu0 %v1946
    %2387 = vmatpush2.bf16.msra.mxu0 %v1945
    %2388 = vmatprep.mubr.bf16.mxu0 %v674
    %2389 = vmatmul.mubr.bf16.gmra.mxu0 %v673
    %v2390 = vpop.f32.mrf.mxu0
    %v2391 = vadd.f32 %v2350, %v2390
    %v2392 = vpop.f32.mrf.mxu0
    %v2393 = vadd.f32 %v2352, %v2392
    %v2394 = vpop.f32.mrf.mxu0
    %v2395 = vpop.f32.mrf.mxu0
    %2396 = vdwg.mxu0
    %2397 = vmatprep.subr.bf16.mxu0 %v1752
    %2398 = vmatpush1.bf16.msra.mxu0 %v1751
    %2399 = vmatprep.subr.bf16.mxu0 %v1748
    %2400 = vmatpush1.bf16.msra.mxu0 %v1747
    %2401 = vmatprep.subr.bf16.mxu0 %v1744
    %2402 = vmatpush1.bf16.msra.mxu0 %v1743
    %2403 = vmatprep.subr.bf16.mxu0 %v1740
    %2404 = vmatpush1.bf16.msra.mxu0 %v1739
    %2405 = vmatprep.subr.bf16.mxu0 %v1736
    %2406 = vmatpush1.bf16.msra.mxu0 %v1735
    %2407 = vmatprep.subr.bf16.mxu0 %v1732
    %2408 = vmatpush1.bf16.msra.mxu0 %v1731
    %2409 = vmatprep.subr.bf16.mxu0 %v1728
    %2410 = vmatpush1.bf16.msra.mxu0 %v1727
    %2411 = vmatprep.subr.bf16.mxu0 %v1724
    %2412 = vmatpush1.bf16.msra.mxu0 %v1723
    %2413 = vmatprep.subr.bf16.mxu0 %v1784
    %2414 = vmatpush2.bf16.msra.mxu0 %v1783
    %2415 = vmatprep.subr.bf16.mxu0 %v1780
    %2416 = vmatpush2.bf16.msra.mxu0 %v1779
    %2417 = vmatprep.subr.bf16.mxu0 %v1776
    %2418 = vmatpush2.bf16.msra.mxu0 %v1775
    %2419 = vmatprep.subr.bf16.mxu0 %v1772
    %2420 = vmatpush2.bf16.msra.mxu0 %v1771
    %2421 = vmatprep.subr.bf16.mxu0 %v1768
    %2422 = vmatpush2.bf16.msra.mxu0 %v1767
    %2423 = vmatprep.subr.bf16.mxu0 %v1764
    %2424 = vmatpush2.bf16.msra.mxu0 %v1763
    %2425 = vmatprep.subr.bf16.mxu0 %v1760
    %2426 = vmatpush2.bf16.msra.mxu0 %v1759
    %2427 = vmatprep.subr.bf16.mxu0 %v1756
    %2428 = vmatpush2.bf16.msra.mxu0 %v1755
    %2429 = vmatprep.mubr.bf16.mxu0 %v668
    %2430 = vmatmul.mubr.bf16.gmra.mxu0 %v667
    %v2431 = vpop.f32.mrf.mxu0
    %v2432 = vadd.f32 %v944, %v2431
    %v2433 = vpop.f32.mrf.mxu0
    %v2434 = vadd.f32 %v948, %v2433
    %v2435 = vpop.f32.mrf.mxu0
    %v2436 = vpop.f32.mrf.mxu0
    %2437 = vdwg.mxu0
    %2438 = vmatprep.subr.bf16.mxu0 %v1816
    %2439 = vmatpush1.bf16.msra.mxu0 %v1815
    %2440 = vmatprep.subr.bf16.mxu0 %v1812
    %2441 = vmatpush1.bf16.msra.mxu0 %v1811
    %2442 = vmatprep.subr.bf16.mxu0 %v1808
    %2443 = vmatpush1.bf16.msra.mxu0 %v1807
    %2444 = vmatprep.subr.bf16.mxu0 %v1804
    %2445 = vmatpush1.bf16.msra.mxu0 %v1803
    %2446 = vmatprep.subr.bf16.mxu0 %v1800
    %2447 = vmatpush1.bf16.msra.mxu0 %v1799
    %2448 = vmatprep.subr.bf16.mxu0 %v1796
    %2449 = vmatpush1.bf16.msra.mxu0 %v1795
    %2450 = vmatprep.subr.bf16.mxu0 %v1792
    %2451 = vmatpush1.bf16.msra.mxu0 %v1791
    %2452 = vmatprep.subr.bf16.mxu0 %v1788
    %2453 = vmatpush1.bf16.msra.mxu0 %v1787
    %2454 = vmatprep.subr.bf16.mxu0 %v1848
    %2455 = vmatpush2.bf16.msra.mxu0 %v1847
    %2456 = vmatprep.subr.bf16.mxu0 %v1844
    %2457 = vmatpush2.bf16.msra.mxu0 %v1843
    %2458 = vmatprep.subr.bf16.mxu0 %v1840
    %2459 = vmatpush2.bf16.msra.mxu0 %v1839
    %2460 = vmatprep.subr.bf16.mxu0 %v1836
    %2461 = vmatpush2.bf16.msra.mxu0 %v1835
    %2462 = vmatprep.subr.bf16.mxu0 %v1832
    %2463 = vmatpush2.bf16.msra.mxu0 %v1831
    %2464 = vmatprep.subr.bf16.mxu0 %v1828
    %2465 = vmatpush2.bf16.msra.mxu0 %v1827
    %2466 = vmatprep.subr.bf16.mxu0 %v1824
    %2467 = vmatpush2.bf16.msra.mxu0 %v1823
    %2468 = vmatprep.subr.bf16.mxu0 %v1820
    %2469 = vmatpush2.bf16.msra.mxu0 %v1819
    %2470 = vmatprep.mubr.bf16.mxu0 %v670
    %2471 = vmatmul.mubr.bf16.gmra.mxu0 %v669
    %v2472 = vpop.f32.mrf.mxu0
    %v2473 = vadd.f32 %v2432, %v2472
    %v2474 = vpop.f32.mrf.mxu0
    %v2475 = vadd.f32 %v2434, %v2474
    %v2476 = vpop.f32.mrf.mxu0
    %v2477 = vpop.f32.mrf.mxu0
    %2478 = vdwg.mxu0
    %2479 = vmatprep.subr.bf16.mxu0 %v1880
    %2480 = vmatpush1.bf16.msra.mxu0 %v1879
    %2481 = vmatprep.subr.bf16.mxu0 %v1876
    %2482 = vmatpush1.bf16.msra.mxu0 %v1875
    %2483 = vmatprep.subr.bf16.mxu0 %v1872
    %2484 = vmatpush1.bf16.msra.mxu0 %v1871
    %2485 = vmatprep.subr.bf16.mxu0 %v1868
    %2486 = vmatpush1.bf16.msra.mxu0 %v1867
    %2487 = vmatprep.subr.bf16.mxu0 %v1864
    %2488 = vmatpush1.bf16.msra.mxu0 %v1863
    %2489 = vmatprep.subr.bf16.mxu0 %v1860
    %2490 = vmatpush1.bf16.msra.mxu0 %v1859
    %2491 = vmatprep.subr.bf16.mxu0 %v1856
    %2492 = vmatpush1.bf16.msra.mxu0 %v1855
    %2493 = vmatprep.subr.bf16.mxu0 %v1852
    %2494 = vmatpush1.bf16.msra.mxu0 %v1851
    %2495 = vmatprep.subr.bf16.mxu0 %v1912
    %2496 = vmatpush2.bf16.msra.mxu0 %v1911
    %2497 = vmatprep.subr.bf16.mxu0 %v1908
    %2498 = vmatpush2.bf16.msra.mxu0 %v1907
    %2499 = vmatprep.subr.bf16.mxu0 %v1904
    %2500 = vmatpush2.bf16.msra.mxu0 %v1903
    %2501 = vmatprep.subr.bf16.mxu0 %v1900
    %2502 = vmatpush2.bf16.msra.mxu0 %v1899
    %2503 = vmatprep.subr.bf16.mxu0 %v1896
    %2504 = vmatpush2.bf16.msra.mxu0 %v1895
    %2505 = vmatprep.subr.bf16.mxu0 %v1892
    %2506 = vmatpush2.bf16.msra.mxu0 %v1891
    %2507 = vmatprep.subr.bf16.mxu0 %v1888
    %2508 = vmatpush2.bf16.msra.mxu0 %v1887
    %2509 = vmatprep.subr.bf16.mxu0 %v1884
    %2510 = vmatpush2.bf16.msra.mxu0 %v1883
    %2511 = vmatprep.mubr.bf16.mxu0 %v672
    %2512 = vmatmul.mubr.bf16.gmra.mxu0 %v671
    %v2513 = vpop.f32.mrf.mxu0
    %v2514 = vadd.f32 %v2473, %v2513
    %v2515 = vpop.f32.mrf.mxu0
    %v2516 = vadd.f32 %v2475, %v2515
    %v2517 = vpop.f32.mrf.mxu0
    %v2518 = vpop.f32.mrf.mxu0
    %2519 = vdwg.mxu0
    %2520 = vmatprep.subr.bf16.mxu0 %v1944
    %2521 = vmatpush1.bf16.msra.mxu0 %v1943
    %2522 = vmatprep.subr.bf16.mxu0 %v1940
    %2523 = vmatpush1.bf16.msra.mxu0 %v1939
    %2524 = vmatprep.subr.bf16.mxu0 %v1936
    %2525 = vmatpush1.bf16.msra.mxu0 %v1935
    %2526 = vmatprep.subr.bf16.mxu0 %v1932
    %2527 = vmatpush1.bf16.msra.mxu0 %v1931
    %2528 = vmatprep.subr.bf16.mxu0 %v1928
    %2529 = vmatpush1.bf16.msra.mxu0 %v1927
    %2530 = vmatprep.subr.bf16.mxu0 %v1924
    %2531 = vmatpush1.bf16.msra.mxu0 %v1923
    %2532 = vmatprep.subr.bf16.mxu0 %v1920
    %2533 = vmatpush1.bf16.msra.mxu0 %v1919
    %2534 = vmatprep.subr.bf16.mxu0 %v1916
    %2535 = vmatpush1.bf16.msra.mxu0 %v1915
    %2536 = vmatprep.subr.bf16.mxu0 %v1976
    %2537 = vmatpush2.bf16.msra.mxu0 %v1975
    %2538 = vmatprep.subr.bf16.mxu0 %v1972
    %2539 = vmatpush2.bf16.msra.mxu0 %v1971
    %2540 = vmatprep.subr.bf16.mxu0 %v1968
    %2541 = vmatpush2.bf16.msra.mxu0 %v1967
    %2542 = vmatprep.subr.bf16.mxu0 %v1964
    %2543 = vmatpush2.bf16.msra.mxu0 %v1963
    %2544 = vmatprep.subr.bf16.mxu0 %v1960
    %2545 = vmatpush2.bf16.msra.mxu0 %v1959
    %2546 = vmatprep.subr.bf16.mxu0 %v1956
    %2547 = vmatpush2.bf16.msra.mxu0 %v1955
    %2548 = vmatprep.subr.bf16.mxu0 %v1952
    %2549 = vmatpush2.bf16.msra.mxu0 %v1951
    %2550 = vmatprep.subr.bf16.mxu0 %v1948
    %2551 = vmatpush2.bf16.msra.mxu0 %v1947
    %2552 = vmatprep.mubr.bf16.mxu0 %v674
    %2553 = vmatmul.mubr.bf16.gmra.mxu0 %v673
    %v2554 = vpop.f32.mrf.mxu0
    %v2555 = vadd.f32 %v2514, %v2554
    %v2556 = vpop.f32.mrf.mxu0
    %v2557 = vadd.f32 %v2516, %v2556
    %v2558 = vpop.f32.mrf.mxu0
    %v2559 = vpop.f32.mrf.mxu0
    %2560 = vdwg.mxu0
    %v2561 = vmax.f32 %v2391, 0.0
    %v2562 = vmax.f32 %v2393, 0.0
    %v2563 = vmax.f32 %v2555, 0.0
    %v2564 = vmax.f32 %v2557, 0.0
    %v2565 = vpack.c.bf16 %v2561, %v2561
    %v2566 = vpack.c.bf16 %v2562, %v2562
    %v2567 = vpack.c.bf16 %v2563, %v2563
    %v2568 = vpack.c.bf16 %v2564, %v2564
    %v2569 = vld [vmem:[#allocation6] sm:$0xff]
    %v2570 = vld [vmem:[#allocation6 + $0x8] sm:$0xff]
    %v2571 = vld [vmem:[#allocation6 + $0x10] sm:$0xff]
    %v2572 = vld [vmem:[#allocation6 + $0x18] sm:$0xff]
    %v2573 = vld [vmem:[#allocation6 + $0x20] sm:$0xff]
    %v2574 = vld [vmem:[#allocation6 + $0x28] sm:$0xff]
    %v2575 = vld [vmem:[#allocation6 + $0x30] sm:$0xff]
    %v2576 = vld [vmem:[#allocation6 + $0x38] sm:$0xff]
    %v2577 = vld [vmem:[#allocation6 + $0x40] sm:$0xff]
    %v2578 = vld [vmem:[#allocation6 + $0x48] sm:$0xff]
    %v2579 = vld [vmem:[#allocation6 + $0x50] sm:$0xff]
    %v2580 = vld [vmem:[#allocation6 + $0x58] sm:$0xff]
    %v2581 = vld [vmem:[#allocation6 + $0x60] sm:$0xff]
    %v2582 = vld [vmem:[#allocation6 + $0x68] sm:$0xff]
    %v2583 = vld [vmem:[#allocation6 + $0x70] sm:$0xff]
    %v2584 = vld [vmem:[#allocation6 + $0x78] sm:$0xff]
    %v2585 = vld [vmem:[#allocation6 + $0x80] sm:$0xff]
    %v2586 = vld [vmem:[#allocation6 + $0x88] sm:$0xff]
    %v2587 = vld [vmem:[#allocation6 + $0x90] sm:$0xff]
    %v2588 = vld [vmem:[#allocation6 + $0x98] sm:$0xff]
    %v2589 = vld [vmem:[#allocation6 + $0xa0] sm:$0xff]
    %v2590 = vld [vmem:[#allocation6 + $0xa8] sm:$0xff]
    %v2591 = vld [vmem:[#allocation6 + $0xb0] sm:$0xff]
    %v2592 = vld [vmem:[#allocation6 + $0xb8] sm:$0xff]
    %v2593 = vld [vmem:[#allocation6 + $0xc0] sm:$0xff]
    %v2594 = vld [vmem:[#allocation6 + $0xc8] sm:$0xff]
    %v2595 = vld [vmem:[#allocation6 + $0xd0] sm:$0xff]
    %v2596 = vld [vmem:[#allocation6 + $0xd8] sm:$0xff]
    %v2597 = vld [vmem:[#allocation6 + $0xe0] sm:$0xff]
    %v2598 = vld [vmem:[#allocation6 + $0xe8] sm:$0xff]
    %v2599 = vld [vmem:[#allocation6 + $0xf0] sm:$0xff]
    %v2600 = vld [vmem:[#allocation6 + $0xf8] sm:$0xff]
    %v2601 = vld [vmem:[#allocation6 + $0x100] sm:$0xff]
    %v2602 = vld [vmem:[#allocation6 + $0x108] sm:$0xff]
    %v2603 = vld [vmem:[#allocation6 + $0x110] sm:$0xff]
    %v2604 = vld [vmem:[#allocation6 + $0x118] sm:$0xff]
    %v2605 = vld [vmem:[#allocation6 + $0x120] sm:$0xff]
    %v2606 = vld [vmem:[#allocation6 + $0x128] sm:$0xff]
    %v2607 = vld [vmem:[#allocation6 + $0x130] sm:$0xff]
    %v2608 = vld [vmem:[#allocation6 + $0x138] sm:$0xff]
    %v2609 = vld [vmem:[#allocation6 + $0x140] sm:$0xff]
    %v2610 = vld [vmem:[#allocation6 + $0x148] sm:$0xff]
    %v2611 = vld [vmem:[#allocation6 + $0x150] sm:$0xff]
    %v2612 = vld [vmem:[#allocation6 + $0x158] sm:$0xff]
    %v2613 = vld [vmem:[#allocation6 + $0x160] sm:$0xff]
    %v2614 = vld [vmem:[#allocation6 + $0x168] sm:$0xff]
    %v2615 = vld [vmem:[#allocation6 + $0x170] sm:$0xff]
    %v2616 = vld [vmem:[#allocation6 + $0x178] sm:$0xff]
    %v2617 = vld [vmem:[#allocation6 + $0x180] sm:$0xff]
    %v2618 = vld [vmem:[#allocation6 + $0x188] sm:$0xff]
    %v2619 = vld [vmem:[#allocation6 + $0x190] sm:$0xff]
    %v2620 = vld [vmem:[#allocation6 + $0x198] sm:$0xff]
    %v2621 = vld [vmem:[#allocation6 + $0x1a0] sm:$0xff]
    %v2622 = vld [vmem:[#allocation6 + $0x1a8] sm:$0xff]
    %v2623 = vld [vmem:[#allocation6 + $0x1b0] sm:$0xff]
    %v2624 = vld [vmem:[#allocation6 + $0x1b8] sm:$0xff]
    %v2625 = vld [vmem:[#allocation6 + $0x1c0] sm:$0xff]
    %v2626 = vld [vmem:[#allocation6 + $0x1c8] sm:$0xff]
    %v2627 = vld [vmem:[#allocation6 + $0x1d0] sm:$0xff]
    %v2628 = vld [vmem:[#allocation6 + $0x1d8] sm:$0xff]
    %v2629 = vld [vmem:[#allocation6 + $0x1e0] sm:$0xff]
    %v2630 = vld [vmem:[#allocation6 + $0x1e8] sm:$0xff]
    %v2631 = vld [vmem:[#allocation6 + $0x1f0] sm:$0xff]
    %v2632 = vld [vmem:[#allocation6 + $0x1f8] sm:$0xff]
    %v2633 = vld [vmem:[%s6] sm:$0x3]
    %v2635 = vlaneseq
    %v2636 = vshrl.u32 %v2635, 7
    %v2637 = vsub.s32 0, %v2636
    %v2638 = vrot.slane %v2633, %v2637
    %v2639 = vlaneseq
    %v2640 = vshrl.u32 %v2639, 7
    %v2641 = vsub.s32 1, %v2640
    %v2642 = vrot.slane %v2633, %v2641
    %v2709 = vunpack.c.l.b16 %v2569
    %v2710 = vunpack.c.h.b16 %v2569
    %v2711 = vunpack.c.l.b16 %v2570
    %v2712 = vunpack.c.h.b16 %v2570
    %v2713 = vunpack.c.l.b16 %v2571
    %v2714 = vunpack.c.h.b16 %v2571
    %v2715 = vunpack.c.l.b16 %v2572
    %v2716 = vunpack.c.h.b16 %v2572
    %v2717 = vunpack.c.l.b16 %v2573
    %v2718 = vunpack.c.h.b16 %v2573
    %v2719 = vunpack.c.l.b16 %v2574
    %v2720 = vunpack.c.h.b16 %v2574
    %v2721 = vunpack.c.l.b16 %v2575
    %v2722 = vunpack.c.h.b16 %v2575
    %v2723 = vunpack.c.l.b16 %v2576
    %v2724 = vunpack.c.h.b16 %v2576
    %v2725 = vunpack.c.l.b16 %v2577
    %v2726 = vunpack.c.h.b16 %v2577
    %v2727 = vunpack.c.l.b16 %v2578
    %v2728 = vunpack.c.h.b16 %v2578
    %v2729 = vunpack.c.l.b16 %v2579
    %v2730 = vunpack.c.h.b16 %v2579
    %v2731 = vunpack.c.l.b16 %v2580
    %v2732 = vunpack.c.h.b16 %v2580
    %v2733 = vunpack.c.l.b16 %v2581
    %v2734 = vunpack.c.h.b16 %v2581
    %v2735 = vunpack.c.l.b16 %v2582
    %v2736 = vunpack.c.h.b16 %v2582
    %v2737 = vunpack.c.l.b16 %v2583
    %v2738 = vunpack.c.h.b16 %v2583
    %v2739 = vunpack.c.l.b16 %v2584
    %v2740 = vunpack.c.h.b16 %v2584
    %v2741 = vunpack.c.l.b16 %v2585
    %v2742 = vunpack.c.h.b16 %v2585
    %v2743 = vunpack.c.l.b16 %v2586
    %v2744 = vunpack.c.h.b16 %v2586
    %v2745 = vunpack.c.l.b16 %v2587
    %v2746 = vunpack.c.h.b16 %v2587
    %v2747 = vunpack.c.l.b16 %v2588
    %v2748 = vunpack.c.h.b16 %v2588
    %v2749 = vunpack.c.l.b16 %v2589
    %v2750 = vunpack.c.h.b16 %v2589
    %v2751 = vunpack.c.l.b16 %v2590
    %v2752 = vunpack.c.h.b16 %v2590
    %v2753 = vunpack.c.l.b16 %v2591
    %v2754 = vunpack.c.h.b16 %v2591
    %v2755 = vunpack.c.l.b16 %v2592
    %v2756 = vunpack.c.h.b16 %v2592
    %v2757 = vunpack.c.l.b16 %v2593
    %v2758 = vunpack.c.h.b16 %v2593
    %v2759 = vunpack.c.l.b16 %v2594
    %v2760 = vunpack.c.h.b16 %v2594
    %v2761 = vunpack.c.l.b16 %v2595
    %v2762 = vunpack.c.h.b16 %v2595
    %v2763 = vunpack.c.l.b16 %v2596
    %v2764 = vunpack.c.h.b16 %v2596
    %v2765 = vunpack.c.l.b16 %v2597
    %v2766 = vunpack.c.h.b16 %v2597
    %v2767 = vunpack.c.l.b16 %v2598
    %v2768 = vunpack.c.h.b16 %v2598
    %v2769 = vunpack.c.l.b16 %v2599
    %v2770 = vunpack.c.h.b16 %v2599
    %v2771 = vunpack.c.l.b16 %v2600
    %v2772 = vunpack.c.h.b16 %v2600
    %v2773 = vunpack.c.l.b16 %v2601
    %v2774 = vunpack.c.h.b16 %v2601
    %v2775 = vunpack.c.l.b16 %v2602
    %v2776 = vunpack.c.h.b16 %v2602
    %v2777 = vunpack.c.l.b16 %v2603
    %v2778 = vunpack.c.h.b16 %v2603
    %v2779 = vunpack.c.l.b16 %v2604
    %v2780 = vunpack.c.h.b16 %v2604
    %v2781 = vunpack.c.l.b16 %v2605
    %v2782 = vunpack.c.h.b16 %v2605
    %v2783 = vunpack.c.l.b16 %v2606
    %v2784 = vunpack.c.h.b16 %v2606
    %v2785 = vunpack.c.l.b16 %v2607
    %v2786 = vunpack.c.h.b16 %v2607
    %v2787 = vunpack.c.l.b16 %v2608
    %v2788 = vunpack.c.h.b16 %v2608
    %v2789 = vunpack.c.l.b16 %v2609
    %v2790 = vunpack.c.h.b16 %v2609
    %v2791 = vunpack.c.l.b16 %v2610
    %v2792 = vunpack.c.h.b16 %v2610
    %v2793 = vunpack.c.l.b16 %v2611
    %v2794 = vunpack.c.h.b16 %v2611
    %v2795 = vunpack.c.l.b16 %v2612
    %v2796 = vunpack.c.h.b16 %v2612
    %v2797 = vunpack.c.l.b16 %v2613
    %v2798 = vunpack.c.h.b16 %v2613
    %v2799 = vunpack.c.l.b16 %v2614
    %v2800 = vunpack.c.h.b16 %v2614
    %v2801 = vunpack.c.l.b16 %v2615
    %v2802 = vunpack.c.h.b16 %v2615
    %v2803 = vunpack.c.l.b16 %v2616
    %v2804 = vunpack.c.h.b16 %v2616
    %v2805 = vunpack.c.l.b16 %v2617
    %v2806 = vunpack.c.h.b16 %v2617
    %v2807 = vunpack.c.l.b16 %v2618
    %v2808 = vunpack.c.h.b16 %v2618
    %v2809 = vunpack.c.l.b16 %v2619
    %v2810 = vunpack.c.h.b16 %v2619
    %v2811 = vunpack.c.l.b16 %v2620
    %v2812 = vunpack.c.h.b16 %v2620
    %v2813 = vunpack.c.l.b16 %v2621
    %v2814 = vunpack.c.h.b16 %v2621
    %v2815 = vunpack.c.l.b16 %v2622
    %v2816 = vunpack.c.h.b16 %v2622
    %v2817 = vunpack.c.l.b16 %v2623
    %v2818 = vunpack.c.h.b16 %v2623
    %v2819 = vunpack.c.l.b16 %v2624
    %v2820 = vunpack.c.h.b16 %v2624
    %v2821 = vunpack.c.l.b16 %v2625
    %v2822 = vunpack.c.h.b16 %v2625
    %v2823 = vunpack.c.l.b16 %v2626
    %v2824 = vunpack.c.h.b16 %v2626
    %v2825 = vunpack.c.l.b16 %v2627
    %v2826 = vunpack.c.h.b16 %v2627
    %v2827 = vunpack.c.l.b16 %v2628
    %v2828 = vunpack.c.h.b16 %v2628
    %v2829 = vunpack.c.l.b16 %v2629
    %v2830 = vunpack.c.h.b16 %v2629
    %v2831 = vunpack.c.l.b16 %v2630
    %v2832 = vunpack.c.h.b16 %v2630
    %v2833 = vunpack.c.l.b16 %v2631
    %v2834 = vunpack.c.h.b16 %v2631
    %v2835 = vunpack.c.l.b16 %v2632
    %v2836 = vunpack.c.h.b16 %v2632
    %v2837 = vpack.c.b16 %v2711, %v2709
    %v2838 = vpack.c.b16 %v2712, %v2710
    %v2839 = vpack.c.b16 %v2715, %v2713
    %v2840 = vpack.c.b16 %v2716, %v2714
    %v2841 = vpack.c.b16 %v2719, %v2717
    %v2842 = vpack.c.b16 %v2720, %v2718
    %v2843 = vpack.c.b16 %v2723, %v2721
    %v2844 = vpack.c.b16 %v2724, %v2722
    %v2845 = vpack.c.b16 %v2727, %v2725
    %v2846 = vpack.c.b16 %v2728, %v2726
    %v2847 = vpack.c.b16 %v2731, %v2729
    %v2848 = vpack.c.b16 %v2732, %v2730
    %v2849 = vpack.c.b16 %v2735, %v2733
    %v2850 = vpack.c.b16 %v2736, %v2734
    %v2851 = vpack.c.b16 %v2739, %v2737
    %v2852 = vpack.c.b16 %v2740, %v2738
    %v2853 = vpack.c.b16 %v2743, %v2741
    %v2854 = vpack.c.b16 %v2744, %v2742
    %v2855 = vpack.c.b16 %v2747, %v2745
    %v2856 = vpack.c.b16 %v2748, %v2746
    %v2857 = vpack.c.b16 %v2751, %v2749
    %v2858 = vpack.c.b16 %v2752, %v2750
    %v2859 = vpack.c.b16 %v2755, %v2753
    %v2860 = vpack.c.b16 %v2756, %v2754
    %v2861 = vpack.c.b16 %v2759, %v2757
    %v2862 = vpack.c.b16 %v2760, %v2758
    %v2863 = vpack.c.b16 %v2763, %v2761
    %v2864 = vpack.c.b16 %v2764, %v2762
    %v2865 = vpack.c.b16 %v2767, %v2765
    %v2866 = vpack.c.b16 %v2768, %v2766
    %v2867 = vpack.c.b16 %v2771, %v2769
    %v2868 = vpack.c.b16 %v2772, %v2770
    %v2869 = vpack.c.b16 %v2775, %v2773
    %v2870 = vpack.c.b16 %v2776, %v2774
    %v2871 = vpack.c.b16 %v2779, %v2777
    %v2872 = vpack.c.b16 %v2780, %v2778
    %v2873 = vpack.c.b16 %v2783, %v2781
    %v2874 = vpack.c.b16 %v2784, %v2782
    %v2875 = vpack.c.b16 %v2787, %v2785
    %v2876 = vpack.c.b16 %v2788, %v2786
    %v2877 = vpack.c.b16 %v2791, %v2789
    %v2878 = vpack.c.b16 %v2792, %v2790
    %v2879 = vpack.c.b16 %v2795, %v2793
    %v2880 = vpack.c.b16 %v2796, %v2794
    %v2881 = vpack.c.b16 %v2799, %v2797
    %v2882 = vpack.c.b16 %v2800, %v2798
    %v2883 = vpack.c.b16 %v2803, %v2801
    %v2884 = vpack.c.b16 %v2804, %v2802
    %v2885 = vpack.c.b16 %v2807, %v2805
    %v2886 = vpack.c.b16 %v2808, %v2806
    %v2887 = vpack.c.b16 %v2811, %v2809
    %v2888 = vpack.c.b16 %v2812, %v2810
    %v2889 = vpack.c.b16 %v2815, %v2813
    %v2890 = vpack.c.b16 %v2816, %v2814
    %v2891 = vpack.c.b16 %v2819, %v2817
    %v2892 = vpack.c.b16 %v2820, %v2818
    %v2893 = vpack.c.b16 %v2823, %v2821
    %v2894 = vpack.c.b16 %v2824, %v2822
    %v2895 = vpack.c.b16 %v2827, %v2825
    %v2896 = vpack.c.b16 %v2828, %v2826
    %v2897 = vpack.c.b16 %v2831, %v2829
    %v2898 = vpack.c.b16 %v2832, %v2830
    %v2899 = vpack.c.b16 %v2835, %v2833
    %v2900 = vpack.c.b16 %v2836, %v2834
    %2965 = vmatprep.subr.bf16.mxu0 %v2852
    %2966 = vmatpush1.bf16.msra.mxu0 %v2851
    %2967 = vmatprep.subr.bf16.mxu0 %v2850
    %2968 = vmatpush1.bf16.msra.mxu0 %v2849
    %2969 = vmatprep.subr.bf16.mxu0 %v2848
    %2970 = vmatpush1.bf16.msra.mxu0 %v2847
    %2971 = vmatprep.subr.bf16.mxu0 %v2846
    %2972 = vmatpush1.bf16.msra.mxu0 %v2845
    %2973 = vmatprep.subr.bf16.mxu0 %v2844
    %2974 = vmatpush1.bf16.msra.mxu0 %v2843
    %2975 = vmatprep.subr.bf16.mxu0 %v2842
    %2976 = vmatpush1.bf16.msra.mxu0 %v2841
    %2977 = vmatprep.subr.bf16.mxu0 %v2840
    %2978 = vmatpush1.bf16.msra.mxu0 %v2839
    %2979 = vmatprep.subr.bf16.mxu0 %v2838
    %2980 = vmatpush1.bf16.msra.mxu0 %v2837
    %2981 = vmatprep.subr.bf16.mxu0 %v2868
    %2982 = vmatpush2.bf16.msra.mxu0 %v2867
    %2983 = vmatprep.subr.bf16.mxu0 %v2866
    %2984 = vmatpush2.bf16.msra.mxu0 %v2865
    %2985 = vmatprep.subr.bf16.mxu0 %v2864
    %2986 = vmatpush2.bf16.msra.mxu0 %v2863
    %2987 = vmatprep.subr.bf16.mxu0 %v2862
    %2988 = vmatpush2.bf16.msra.mxu0 %v2861
    %2989 = vmatprep.subr.bf16.mxu0 %v2860
    %2990 = vmatpush2.bf16.msra.mxu0 %v2859
    %2991 = vmatprep.subr.bf16.mxu0 %v2858
    %2992 = vmatpush2.bf16.msra.mxu0 %v2857
    %2993 = vmatprep.subr.bf16.mxu0 %v2856
    %2994 = vmatpush2.bf16.msra.mxu0 %v2855
    %2995 = vmatprep.subr.bf16.mxu0 %v2854
    %2996 = vmatpush2.bf16.msra.mxu0 %v2853
    %2997 = vmatprep.mubr.bf16.mxu0 %v2566
    %2998 = vmatmul.mubr.bf16.gmra.mxu0 %v2565
    %v2999 = vpop.f32.mrf.mxu0
    %v3000 = vadd.f32 %v2638, %v2999
    %v3001 = vpop.f32.mrf.mxu0
    %v3002 = vadd.f32 %v2642, %v3001
    %v3003 = vpop.f32.mrf.mxu0
    %v3004 = vpop.f32.mrf.mxu0
    %3005 = vdwg.mxu0
    %3006 = vmatprep.subr.bf16.mxu0 %v2884
    %3007 = vmatpush1.bf16.msra.mxu0 %v2883
    %3008 = vmatprep.subr.bf16.mxu0 %v2882
    %3009 = vmatpush1.bf16.msra.mxu0 %v2881
    %3010 = vmatprep.subr.bf16.mxu0 %v2880
    %3011 = vmatpush1.bf16.msra.mxu0 %v2879
    %3012 = vmatprep.subr.bf16.mxu0 %v2878
    %3013 = vmatpush1.bf16.msra.mxu0 %v2877
    %3014 = vmatprep.subr.bf16.mxu0 %v2876
    %3015 = vmatpush1.bf16.msra.mxu0 %v2875
    %3016 = vmatprep.subr.bf16.mxu0 %v2874
    %3017 = vmatpush1.bf16.msra.mxu0 %v2873
    %3018 = vmatprep.subr.bf16.mxu0 %v2872
    %3019 = vmatpush1.bf16.msra.mxu0 %v2871
    %3020 = vmatprep.subr.bf16.mxu0 %v2870
    %3021 = vmatpush1.bf16.msra.mxu0 %v2869
    %3022 = vmatprep.subr.bf16.mxu0 %v2900
    %3023 = vmatpush2.bf16.msra.mxu0 %v2899
    %3024 = vmatprep.subr.bf16.mxu0 %v2898
    %3025 = vmatpush2.bf16.msra.mxu0 %v2897
    %3026 = vmatprep.subr.bf16.mxu0 %v2896
    %3027 = vmatpush2.bf16.msra.mxu0 %v2895
    %3028 = vmatprep.subr.bf16.mxu0 %v2894
    %3029 = vmatpush2.bf16.msra.mxu0 %v2893
    %3030 = vmatprep.subr.bf16.mxu0 %v2892
    %3031 = vmatpush2.bf16.msra.mxu0 %v2891
    %3032 = vmatprep.subr.bf16.mxu0 %v2890
    %3033 = vmatpush2.bf16.msra.mxu0 %v2889
    %3034 = vmatprep.subr.bf16.mxu0 %v2888
    %3035 = vmatpush2.bf16.msra.mxu0 %v2887
    %3036 = vmatprep.subr.bf16.mxu0 %v2886
    %3037 = vmatpush2.bf16.msra.mxu0 %v2885
    %3038 = vmatprep.mubr.bf16.mxu0 %v2568
    %3039 = vmatmul.mubr.bf16.gmra.mxu0 %v2567
    %v3040 = vpop.f32.mrf.mxu0
    %v3041 = vadd.f32 %v3000, %v3040
    %v3042 = vpop.f32.mrf.mxu0
    %v3043 = vadd.f32 %v3002, %v3042
    %v3044 = vpop.f32.mrf.mxu0
    %v3045 = vpop.f32.mrf.mxu0
    %3046 = vdwg.mxu0
    %v3047 = vmax.f32 %v3041, 0.0
    %v3048 = vmax.f32 %v3043, 0.0
    %3049 = vst [vmem:[%s7] sm:$0xff] %v3047
    %3050 = vst [vmem:[%s7 + $0x8] sm:$0xff] %v3048
    // Predicated region
    $region42: #{improved_alexnet_forward.1} parent=1 // pred_check
      _
    $region43: #{improved_alexnet_forward.1} parent=1 // pred_check_branch
      %3052 = sbr.rel (0) target = $region45
    $region44: #{improved_alexnet_forward.1} parent=1 // pred_region
      _
    $region45: #{improved_alexnet_forward.1} parent=1 // pred_fallthru
      _
    // Predicated region
    $region46: #{improved_alexnet_forward.1} parent=1 // pred_check
      _
    $region47: #{improved_alexnet_forward.1} parent=1 // pred_check_branch
      %3054 = sbr.rel (0) target = $region49
    $region48: #{improved_alexnet_forward.1} parent=1 // pred_region
      _
    $region49: #{improved_alexnet_forward.1} parent=1 // pred_fallthru
      _
    %3055 = vsyncpa [#allocation3], 1
    %3056 = vsyncpa [#allocation5], 1

</llo_original>
